<compile_context>
chip_gen: v6e
topology: v6e:2x2x1
jax: 0.10.0
libtpu: 0.0.40
codegen_flags: <defaults>
</compile_context>

<pallas_src>
import functools
import math

import jax
import jax.numpy as jnp
from jax import lax
from jax.experimental import pallas as pl
from jax.experimental.pallas import tpu as pltpu


def _mha_body(q_ref, k_ref, v_ref, mask_ref,
              wq_ref, bq_ref, wk_ref, bk_ref, wv_ref, bv_ref,
              wo_ref, bo_ref, out_ref, *, num_heads, d_k, d_v):
    """One (batch, q-tile) step.

    q_ref            : (1, tq,   dModel) bf16
    k_ref / v_ref    : (1, S_kv, dModel) bf16
    mask_ref         : (1, tq, S_kv) bf16 (nonzero = masked), or None
    wq_ref / wk_ref  : (dModel, H*dK) bf16 (wq/bq pre-scaled by 1/sqrt(dK))
    wv_ref           : (dModel, H*dV) bf16
    wo_ref           : (H*dV, dModel) bf16
    bq/bk/bv/bo refs : (1, H*dK) / (1, H*dK) / (1, H*dV) / (1, dModel) f32
    out_ref          : (1, tq, dModel) f32
    """
    q = q_ref[0]            # (tq, dModel)
    k = k_ref[0]            # (S_kv, dModel)
    v = v_ref[0]

    # Packed projections: one MXU matmul each, covering ALL heads (big N-dim).
    qh = jnp.dot(q, wq_ref[...], preferred_element_type=jnp.float32) + bq_ref[...]
    kh = jnp.dot(k, wk_ref[...], preferred_element_type=jnp.float32) + bk_ref[...]
    vh = jnp.dot(v, wv_ref[...], preferred_element_type=jnp.float32) + bv_ref[...]

    qh_b = qh.astype(jnp.bfloat16)
    kh_b = kh.astype(jnp.bfloat16)
    vh_b = vh.astype(jnp.bfloat16)

    masked = None
    if mask_ref is not None:
        # f32 compare (v5e VPU has no bf16 path); nonzero => masked.
        masked = mask_ref[0].astype(jnp.float32) > 0.5   # (tq, S_kv) bool

    head_outs = []
    for h in range(num_heads):                           # static loop over heads
        qh_h = qh_b[:, h * d_k:(h + 1) * d_k]            # (tq, dK)
        kh_h = kh_b[:, h * d_k:(h + 1) * d_k]            # (S_kv, dK)
        vh_h = vh_b[:, h * d_v:(h + 1) * d_v]            # (S_kv, dV)

        # q . k^T without materializing a transpose (contract last dims).
        scores = lax.dot_general(qh_h, kh_h, (((1,), (1,)), ((), ())),
                                 preferred_element_type=jnp.float32)  # (tq, S_kv)
        if masked is not None:
            # Exact torch.masked_fill_ semantics (replace, not add).
            scores = jnp.where(masked, jnp.float32(-10000.0), scores)

        # Softmax in f32 (statistics / exp kept f32 for accuracy on all gens).
        m = jnp.max(scores, axis=-1, keepdims=True)
        e = jnp.exp(scores - m)
        r = pl.reciprocal(jnp.sum(e, axis=-1, keepdims=True), approx=True)
        attn = (e * r).astype(jnp.bfloat16)
        # TODO(synk): dropout on `attn` is identity for p=0.0 (inference); no RNG drawn here.

        head_outs.append(jnp.dot(attn, vh_h, preferred_element_type=jnp.float32))

    # Single big-K output projection: (tq, H*dV) @ (H*dV, dModel) + bias.
    head_cat = jnp.concatenate(head_outs, axis=-1).astype(jnp.bfloat16)
    out = jnp.dot(head_cat, wo_ref[...], preferred_element_type=jnp.float32) + bo_ref[...]
    out_ref[...] = out[None].astype(out_ref.dtype)


def _make_kernel(num_heads, d_k, d_v, has_mask):
    if has_mask:
        def kernel(q_ref, k_ref, v_ref, mask_ref, wq_ref, bq_ref, wk_ref,
                   bk_ref, wv_ref, bv_ref, wo_ref, bo_ref, out_ref):
            _mha_body(q_ref, k_ref, v_ref, mask_ref, wq_ref, bq_ref, wk_ref,
                      bk_ref, wv_ref, bv_ref, wo_ref, bo_ref, out_ref,
                      num_heads=num_heads, d_k=d_k, d_v=d_v)
    else:
        def kernel(q_ref, k_ref, v_ref, wq_ref, bq_ref, wk_ref,
                   bk_ref, wv_ref, bv_ref, wo_ref, bo_ref, out_ref):
            _mha_body(q_ref, k_ref, v_ref, None, wq_ref, bq_ref, wk_ref,
                      bk_ref, wv_ref, bv_ref, wo_ref, bo_ref, out_ref,
                      num_heads=num_heads, d_k=d_k, d_v=d_v)
    return kernel


def _choose_q_tile(S, target=256):
    """Query-tile size: full S for small sequences, else a divisor tile."""
    if S <= target:
        return S
    for t in (target, 128, 64, 32, 16, 8):
        if S % t == 0:
            return t
    return S


def mha_forward(Q, K, V, params, num_heads, d_k, d_v, attn_mask=None):
    """Q: (N, S_q, dModel), K/V: (N, S_kv, dModel) f32.
    attn_mask: (N, S_q, S_kv) (nonzero = masked) or None."""
    N, S_q, d_model = Q.shape
    S_kv = K.shape[1]
    hdk = num_heads * d_k
    hdv = num_heads * d_v

    # Fold the 1/sqrt(dK) score scaling into the Q projection (free in-kernel).
    scale = 1.0 / math.sqrt(d_k)
    wq = (params["wq"] * scale).astype(jnp.bfloat16)
    bq = (params["bq"] * scale).reshape(1, hdk).astype(jnp.float32)
    wk = params["wk"].astype(jnp.bfloat16)
    bk = params["bk"].reshape(1, hdk).astype(jnp.float32)
    wv = params["wv"].astype(jnp.bfloat16)
    bv = params["bv"].reshape(1, hdv).astype(jnp.float32)
    wo = params["wo"].astype(jnp.bfloat16)
    bo = params["bo"].reshape(1, d_model).astype(jnp.float32)

    Qb = Q.astype(jnp.bfloat16)
    Kb = K.astype(jnp.bfloat16)
    Vb = V.astype(jnp.bfloat16)

    has_mask = attn_mask is not None
    if has_mask:
        # bf16 {0,1} mask: half the HBM/VMEM traffic of an f32 mask.
        mask_b = (attn_mask != 0).astype(jnp.bfloat16)

    tq = _choose_q_tile(S_q)
    n_qt = S_q // tq
    grid = (N, n_qt)

    q_spec = pl.BlockSpec((1, tq, d_model), lambda n, t: (n, t, 0))
    kv_spec = pl.BlockSpec((1, S_kv, d_model), lambda n, t: (n, 0, 0))
    mask_spec = pl.BlockSpec((1, tq, S_kv), lambda n, t: (n, t, 0))
    wq_spec = pl.BlockSpec((d_model, hdk), lambda n, t: (0, 0))
    bq_spec = pl.BlockSpec((1, hdk), lambda n, t: (0, 0))
    wv_spec = pl.BlockSpec((d_model, hdv), lambda n, t: (0, 0))
    bv_spec = pl.BlockSpec((1, hdv), lambda n, t: (0, 0))
    wo_spec = pl.BlockSpec((hdv, d_model), lambda n, t: (0, 0))
    bo_spec = pl.BlockSpec((1, d_model), lambda n, t: (0, 0))
    out_spec = pl.BlockSpec((1, tq, d_model), lambda n, t: (n, t, 0))

    in_specs = [q_spec, kv_spec, kv_spec]
    args = [Qb, Kb, Vb]
    if has_mask:
        in_specs.append(mask_spec)
        args.append(mask_b)
    in_specs += [wq_spec, bq_spec, wq_spec, bq_spec, wv_spec, bv_spec,
                 wo_spec, bo_spec]
    args += [wq, bq, wk, bk, wv, bv, wo, bo]

    kernel = _make_kernel(num_heads, d_k, d_v, has_mask)

    return pl.pallas_call(
        kernel,
        out_shape=jax.ShapeDtypeStruct((N, S_q, d_model), jnp.float32),
        grid_spec=pltpu.PrefetchScalarGridSpec(
            num_scalar_prefetch=0,
            grid=grid,
            in_specs=in_specs,
            out_specs=out_spec,
        ),
        compiler_params=pltpu.CompilerParams(
            dimension_semantics=("parallel", "parallel"),
            vmem_limit_bytes=48 * 1024 * 1024),
    )(*args)


def init_params(key, d_k, d_v, d_model, num_heads):
    """Packed-layout params mirroring the PyTorch module (nn.Linear: x @ W^T + b).

    Weights are stored in (in, out) layout: wq/wk (dModel, H*dK), wv (dModel, H*dV),
    wo (H*dV, dModel); biases are flat, as in the module.
    """
    ks = jax.random.split(key, 8)
    std_qk = math.sqrt(2.0 / (d_model + d_k))
    std_v = math.sqrt(2.0 / (d_model + d_v))
    return {
        "wq": jax.random.normal(ks[0], (d_model, d_k * num_heads), jnp.float32) * std_qk,
        "wk": jax.random.normal(ks[1], (d_model, d_k * num_heads), jnp.float32) * std_qk,
        "wv": jax.random.normal(ks[2], (d_model, d_v * num_heads), jnp.float32) * std_v,
        "wo": jax.random.normal(ks[3], (d_v * num_heads, d_model), jnp.float32) * std_v,
        "bq": jax.random.normal(ks[4], (d_k * num_heads,), jnp.float32) * 0.02,
        "bk": jax.random.normal(ks[5], (d_k * num_heads,), jnp.float32) * 0.02,
        "bv": jax.random.normal(ks[6], (d_v * num_heads,), jnp.float32) * 0.02,
        "bo": jax.random.normal(ks[7], (d_model,), jnp.float32) * 0.02,
    }


def mha_reference(Q, K, V, params, num_heads, d_k, d_v, attn_mask=None):
    """Pure-JAX f32 reference matching the PyTorch forward (p=0 dropout)."""
    N, S_q, d_model = Q.shape
    S_kv = K.shape[1]
    qh = (Q @ params["wq"] + params["bq"]).reshape(N, S_q, num_heads, d_k).transpose(0, 2, 1, 3)
    kh = (K @ params["wk"] + params["bk"]).reshape(N, S_kv, num_heads, d_k).transpose(0, 2, 1, 3)
    vh = (V @ params["wv"] + params["bv"]).reshape(N, S_kv, num_heads, d_v).transpose(0, 2, 1, 3)
    scores = jnp.einsum("nhqd,nhkd->nhqk", qh, kh) / math.sqrt(d_k)
    if attn_mask is not None:
        scores = jnp.where(attn_mask[:, None] != 0, -10000.0, scores)
    attn = jax.nn.softmax(scores, axis=-1)
    out_h = jnp.einsum("nhqk,nhkv->nhqv", attn, vh)
    out = out_h.transpose(0, 2, 1, 3).reshape(N, S_q, num_heads * d_v)
    return out @ params["wo"] + params["bo"]


if __name__ == "__main__":
    N, S = 2, 8
    d_model, d_k, d_v, num_heads = 32, 8, 8, 4

    key = jax.random.PRNGKey(0)
    kq, kk, kv, km, kp = jax.random.split(key, 5)
    Q = jax.random.normal(kq, (N, S, d_model), jnp.float32)
    K = jax.random.normal(kk, (N, S, d_model), jnp.float32)
    V = jax.random.normal(kv, (N, S, d_model), jnp.float32)
    # Random boolean-ish mask (nonzero => masked), like attnMask.bool().
    attn_mask = (jax.random.uniform(km, (N, S, S)) > 0.8).astype(jnp.float32)

    params = init_params(kp, d_k, d_v, d_model, num_heads)

    out = jax.block_until_ready(
        mha_forward(Q, K, V, params, num_heads, d_k, d_v, attn_mask))
    assert out.shape == (N, S, d_model)

    # Also exercise the compile-time no-mask specialization.
    out_nm = jax.block_until_ready(
        mha_forward(Q, K, V, params, num_heads, d_k, d_v, None))

    ref = mha_reference(Q, K, V, params, num_heads, d_k, d_v, attn_mask)
    ref_nm = mha_reference(Q, K, V, params, num_heads, d_k, d_v, None)

    # bf16 matmul operands (f32 accumulation) => looser tolerance than pure f32.
    scale = float(jnp.max(jnp.abs(ref))) + 1.0
    err = float(jnp.max(jnp.abs(out - ref)))
    err_nm = float(jnp.max(jnp.abs(out_nm - ref_nm)))
    assert err <= 5e-2 * scale, f"masked path: max abs err {err} (scale {scale})"
    assert err_nm <= 5e-2 * scale, f"no-mask path: max abs err {err_nm} (scale {scale})"

    print("KERNEL_OK")
</pallas_src>

<mosaic_0001>
module attributes {stable_mosaic.version = 11 : i64} {
  func.func @kernel(%arg0: i32, %arg1: i32, %arg2: memref<1x8x32xbf16, #tpu.memory_space<vmem>>, %arg3: memref<1x8x32xbf16, #tpu.memory_space<vmem>>, %arg4: memref<1x8x32xbf16, #tpu.memory_space<vmem>>, %arg5: memref<1x8x8xbf16, #tpu.memory_space<vmem>>, %arg6: memref<32x32xbf16, #tpu.memory_space<vmem>>, %arg7: memref<1x32xf32, #tpu.memory_space<vmem>>, %arg8: memref<32x32xbf16, #tpu.memory_space<vmem>>, %arg9: memref<1x32xf32, #tpu.memory_space<vmem>>, %arg10: memref<32x32xbf16, #tpu.memory_space<vmem>>, %arg11: memref<1x32xf32, #tpu.memory_space<vmem>>, %arg12: memref<32x32xbf16, #tpu.memory_space<vmem>>, %arg13: memref<1x32xf32, #tpu.memory_space<vmem>>, %arg14: memref<1x8x32xf32, #tpu.memory_space<vmem>>) attributes {dimension_semantics = [#tpu.dimension_semantics<parallel>, #tpu.dimension_semantics<parallel>], iteration_bounds = array<i64: 2, 1>, scalar_prefetch = 0 : i64, scratch_operands = 0 : i64, tpu.core_type = #tpu.core_type<tc>, window_params = [{transform_indices = @transform_0, window_bounds = array<i64: 1, 8, 32>}, {transform_indices = @transform_1, window_bounds = array<i64: 1, 8, 32>}, {transform_indices = @transform_2, window_bounds = array<i64: 1, 8, 32>}, {transform_indices = @transform_3, window_bounds = array<i64: 1, 8, 8>}, {pipeline_mode = #tpu.pipeline_mode<synchronous>, transform_indices = @transform_4, window_bounds = array<i64: 32, 32>}, {pipeline_mode = #tpu.pipeline_mode<synchronous>, transform_indices = @transform_5, window_bounds = array<i64: 1, 32>}, {pipeline_mode = #tpu.pipeline_mode<synchronous>, transform_indices = @transform_6, window_bounds = array<i64: 32, 32>}, {pipeline_mode = #tpu.pipeline_mode<synchronous>, transform_indices = @transform_7, window_bounds = array<i64: 1, 32>}, {pipeline_mode = #tpu.pipeline_mode<synchronous>, transform_indices = @transform_8, window_bounds = array<i64: 32, 32>}, {pipeline_mode = #tpu.pipeline_mode<synchronous>, transform_indices = @transform_9, window_bounds = array<i64: 1, 32>}, {pipeline_mode = #tpu.pipeline_mode<synchronous>, transform_indices = @transform_10, window_bounds = array<i64: 32, 32>}, {pipeline_mode = #tpu.pipeline_mode<synchronous>, transform_indices = @transform_11, window_bounds = array<i64: 1, 32>}, {transform_indices = @transform_12, window_bounds = array<i64: 1, 8, 32>}]} {
    %c0 = arith.constant 0 : index
    %c0_0 = arith.constant 0 : index
    %c0_1 = arith.constant 0 : index
    %0 = vector.load %arg2[%c0, %c0_0, %c0_1] : memref<1x8x32xbf16, #tpu.memory_space<vmem>>, vector<1x8x32xbf16>
    %1 = vector.shape_cast %0 : vector<1x8x32xbf16> to vector<8x32xbf16>
    %c0_2 = arith.constant 0 : index
    %c0_3 = arith.constant 0 : index
    %c0_4 = arith.constant 0 : index
    %2 = vector.load %arg3[%c0_2, %c0_3, %c0_4] : memref<1x8x32xbf16, #tpu.memory_space<vmem>>, vector<1x8x32xbf16>
    %3 = vector.shape_cast %2 : vector<1x8x32xbf16> to vector<8x32xbf16>
    %c0_5 = arith.constant 0 : index
    %c0_6 = arith.constant 0 : index
    %c0_7 = arith.constant 0 : index
    %4 = vector.load %arg4[%c0_5, %c0_6, %c0_7] : memref<1x8x32xbf16, #tpu.memory_space<vmem>>, vector<1x8x32xbf16>
    %5 = vector.shape_cast %4 : vector<1x8x32xbf16> to vector<8x32xbf16>
    %c0_8 = arith.constant 0 : index
    %c0_9 = arith.constant 0 : index
    %6 = vector.load %arg6[%c0_8, %c0_9] : memref<32x32xbf16, #tpu.memory_space<vmem>>, vector<32x32xbf16>
    %cst = arith.constant dense<0.000000e+00> : vector<8x32xf32>
    %7 = tpu.matmul %1, %6, %cst {dimension_numbers = #tpu.dot_dimension_numbers<[1], [0], [0], [1], [0, 0, 1, 1], [], []>} : vector<8x32xbf16>, vector<32x32xbf16>, vector<8x32xf32> -> vector<8x32xf32>
    %c0_10 = arith.constant 0 : index
    %c0_11 = arith.constant 0 : index
    %8 = vector.load %arg7[%c0_10, %c0_11] : memref<1x32xf32, #tpu.memory_space<vmem>>, vector<1x32xf32>
    %9 = vector.broadcast %8 : vector<1x32xf32> to vector<8x32xf32>
    %10 = arith.addf %7, %9 : vector<8x32xf32>
    %c0_12 = arith.constant 0 : index
    %c0_13 = arith.constant 0 : index
    %11 = vector.load %arg8[%c0_12, %c0_13] : memref<32x32xbf16, #tpu.memory_space<vmem>>, vector<32x32xbf16>
    %cst_14 = arith.constant dense<0.000000e+00> : vector<8x32xf32>
    %12 = tpu.matmul %3, %11, %cst_14 {dimension_numbers = #tpu.dot_dimension_numbers<[1], [0], [0], [1], [0, 0, 1, 1], [], []>} : vector<8x32xbf16>, vector<32x32xbf16>, vector<8x32xf32> -> vector<8x32xf32>
    %c0_15 = arith.constant 0 : index
    %c0_16 = arith.constant 0 : index
    %13 = vector.load %arg9[%c0_15, %c0_16] : memref<1x32xf32, #tpu.memory_space<vmem>>, vector<1x32xf32>
    %14 = vector.broadcast %13 : vector<1x32xf32> to vector<8x32xf32>
    %15 = arith.addf %12, %14 : vector<8x32xf32>
    %c0_17 = arith.constant 0 : index
    %c0_18 = arith.constant 0 : index
    %16 = vector.load %arg10[%c0_17, %c0_18] : memref<32x32xbf16, #tpu.memory_space<vmem>>, vector<32x32xbf16>
    %cst_19 = arith.constant dense<0.000000e+00> : vector<8x32xf32>
    %17 = tpu.matmul %5, %16, %cst_19 {dimension_numbers = #tpu.dot_dimension_numbers<[1], [0], [0], [1], [0, 0, 1, 1], [], []>} : vector<8x32xbf16>, vector<32x32xbf16>, vector<8x32xf32> -> vector<8x32xf32>
    %c0_20 = arith.constant 0 : index
    %c0_21 = arith.constant 0 : index
    %18 = vector.load %arg11[%c0_20, %c0_21] : memref<1x32xf32, #tpu.memory_space<vmem>>, vector<1x32xf32>
    %19 = vector.broadcast %18 : vector<1x32xf32> to vector<8x32xf32>
    %20 = arith.addf %17, %19 : vector<8x32xf32>
    %21 = arith.truncf %10 : vector<8x32xf32> to vector<8x32xbf16>
    %22 = arith.truncf %15 : vector<8x32xf32> to vector<8x32xbf16>
    %23 = arith.truncf %20 : vector<8x32xf32> to vector<8x32xbf16>
    %c0_22 = arith.constant 0 : index
    %c0_23 = arith.constant 0 : index
    %c0_24 = arith.constant 0 : index
    %24 = vector.load %arg5[%c0_22, %c0_23, %c0_24] : memref<1x8x8xbf16, #tpu.memory_space<vmem>>, vector<1x8x8xbf16>
    %25 = vector.shape_cast %24 : vector<1x8x8xbf16> to vector<8x8xbf16>
    %26 = arith.extf %25 : vector<8x8xbf16> to vector<8x8xf32>
    %cst_25 = arith.constant 5.000000e-01 : f32
    %27 = vector.broadcast %cst_25 : f32 to vector<8x8xf32>
    %28 = arith.cmpf ogt, %26, %27 : vector<8x8xf32>
    %29 = vector.extract_strided_slice %21 {offsets = [0, 0], sizes = [8, 8], strides = [1, 1]} : vector<8x32xbf16> to vector<8x8xbf16>
    %30 = vector.extract_strided_slice %22 {offsets = [0, 0], sizes = [8, 8], strides = [1, 1]} : vector<8x32xbf16> to vector<8x8xbf16>
    %31 = vector.extract_strided_slice %23 {offsets = [0, 0], sizes = [8, 8], strides = [1, 1]} : vector<8x32xbf16> to vector<8x8xbf16>
    %cst_26 = arith.constant dense<0.000000e+00> : vector<8x8xf32>
    %32 = tpu.matmul %29, %30, %cst_26 {dimension_numbers = #tpu.dot_dimension_numbers<[1], [1], [0], [0], [0, 0, 1, 0], [], []>} : vector<8x8xbf16>, vector<8x8xbf16>, vector<8x8xf32> -> vector<8x8xf32>
    %cst_27 = arith.constant -1.000000e+04 : f32
    %33 = vector.broadcast %cst_27 : f32 to vector<8x8xf32>
    %34 = arith.select %28, %33, %32 : vector<8x8xi1>, vector<8x8xf32>
    %cst_28 = arith.constant dense<0xFF800000> : vector<8xf32>
    %35 = vector.multi_reduction <maximumf>, %34, %cst_28 [1] : vector<8x8xf32> to vector<8xf32>
    %36 = vector.shape_cast %35 : vector<8xf32> to vector<8x1xf32>
    %37 = vector.broadcast %36 : vector<8x1xf32> to vector<8x8xf32>
    %38 = arith.subf %34, %37 : vector<8x8xf32>
    %39 = math.exp %38 : vector<8x8xf32>
    %cst_29 = arith.constant dense<0.000000e+00> : vector<8xf32>
    %40 = vector.multi_reduction <add>, %39, %cst_29 [1] : vector<8x8xf32> to vector<8xf32>
    %41 = vector.shape_cast %40 : vector<8xf32> to vector<8x1xf32>
    %42 = tpu.reciprocal %41 {approx = true} : vector<8x1xf32> -> vector<8x1xf32>
    %43 = vector.broadcast %42 : vector<8x1xf32> to vector<8x8xf32>
    %44 = arith.mulf %39, %43 : vector<8x8xf32>
    %45 = arith.truncf %44 : vector<8x8xf32> to vector<8x8xbf16>
    %cst_30 = arith.constant dense<0.000000e+00> : vector<8x8xf32>
    %46 = tpu.matmul %45, %31, %cst_30 {dimension_numbers = #tpu.dot_dimension_numbers<[1], [0], [0], [1], [0, 0, 1, 1], [], []>} : vector<8x8xbf16>, vector<8x8xbf16>, vector<8x8xf32> -> vector<8x8xf32>
    %47 = vector.extract_strided_slice %21 {offsets = [0, 8], sizes = [8, 8], strides = [1, 1]} : vector<8x32xbf16> to vector<8x8xbf16>
    %48 = vector.extract_strided_slice %22 {offsets = [0, 8], sizes = [8, 8], strides = [1, 1]} : vector<8x32xbf16> to vector<8x8xbf16>
    %49 = vector.extract_strided_slice %23 {offsets = [0, 8], sizes = [8, 8], strides = [1, 1]} : vector<8x32xbf16> to vector<8x8xbf16>
    %cst_31 = arith.constant dense<0.000000e+00> : vector<8x8xf32>
    %50 = tpu.matmul %47, %48, %cst_31 {dimension_numbers = #tpu.dot_dimension_numbers<[1], [1], [0], [0], [0, 0, 1, 0], [], []>} : vector<8x8xbf16>, vector<8x8xbf16>, vector<8x8xf32> -> vector<8x8xf32>
    %cst_32 = arith.constant -1.000000e+04 : f32
    %51 = vector.broadcast %cst_32 : f32 to vector<8x8xf32>
    %52 = arith.select %28, %51, %50 : vector<8x8xi1>, vector<8x8xf32>
    %cst_33 = arith.constant dense<0xFF800000> : vector<8xf32>
    %53 = vector.multi_reduction <maximumf>, %52, %cst_33 [1] : vector<8x8xf32> to vector<8xf32>
    %54 = vector.shape_cast %53 : vector<8xf32> to vector<8x1xf32>
    %55 = vector.broadcast %54 : vector<8x1xf32> to vector<8x8xf32>
    %56 = arith.subf %52, %55 : vector<8x8xf32>
    %57 = math.exp %56 : vector<8x8xf32>
    %cst_34 = arith.constant dense<0.000000e+00> : vector<8xf32>
    %58 = vector.multi_reduction <add>, %57, %cst_34 [1] : vector<8x8xf32> to vector<8xf32>
    %59 = vector.shape_cast %58 : vector<8xf32> to vector<8x1xf32>
    %60 = tpu.reciprocal %59 {approx = true} : vector<8x1xf32> -> vector<8x1xf32>
    %61 = vector.broadcast %60 : vector<8x1xf32> to vector<8x8xf32>
    %62 = arith.mulf %57, %61 : vector<8x8xf32>
    %63 = arith.truncf %62 : vector<8x8xf32> to vector<8x8xbf16>
    %cst_35 = arith.constant dense<0.000000e+00> : vector<8x8xf32>
    %64 = tpu.matmul %63, %49, %cst_35 {dimension_numbers = #tpu.dot_dimension_numbers<[1], [0], [0], [1], [0, 0, 1, 1], [], []>} : vector<8x8xbf16>, vector<8x8xbf16>, vector<8x8xf32> -> vector<8x8xf32>
    %65 = vector.extract_strided_slice %21 {offsets = [0, 16], sizes = [8, 8], strides = [1, 1]} : vector<8x32xbf16> to vector<8x8xbf16>
    %66 = vector.extract_strided_slice %22 {offsets = [0, 16], sizes = [8, 8], strides = [1, 1]} : vector<8x32xbf16> to vector<8x8xbf16>
    %67 = vector.extract_strided_slice %23 {offsets = [0, 16], sizes = [8, 8], strides = [1, 1]} : vector<8x32xbf16> to vector<8x8xbf16>
    %cst_36 = arith.constant dense<0.000000e+00> : vector<8x8xf32>
    %68 = tpu.matmul %65, %66, %cst_36 {dimension_numbers = #tpu.dot_dimension_numbers<[1], [1], [0], [0], [0, 0, 1, 0], [], []>} : vector<8x8xbf16>, vector<8x8xbf16>, vector<8x8xf32> -> vector<8x8xf32>
    %cst_37 = arith.constant -1.000000e+04 : f32
    %69 = vector.broadcast %cst_37 : f32 to vector<8x8xf32>
    %70 = arith.select %28, %69, %68 : vector<8x8xi1>, vector<8x8xf32>
    %cst_38 = arith.constant dense<0xFF800000> : vector<8xf32>
    %71 = vector.multi_reduction <maximumf>, %70, %cst_38 [1] : vector<8x8xf32> to vector<8xf32>
    %72 = vector.shape_cast %71 : vector<8xf32> to vector<8x1xf32>
    %73 = vector.broadcast %72 : vector<8x1xf32> to vector<8x8xf32>
    %74 = arith.subf %70, %73 : vector<8x8xf32>
    %75 = math.exp %74 : vector<8x8xf32>
    %cst_39 = arith.constant dense<0.000000e+00> : vector<8xf32>
    %76 = vector.multi_reduction <add>, %75, %cst_39 [1] : vector<8x8xf32> to vector<8xf32>
    %77 = vector.shape_cast %76 : vector<8xf32> to vector<8x1xf32>
    %78 = tpu.reciprocal %77 {approx = true} : vector<8x1xf32> -> vector<8x1xf32>
    %79 = vector.broadcast %78 : vector<8x1xf32> to vector<8x8xf32>
    %80 = arith.mulf %75, %79 : vector<8x8xf32>
    %81 = arith.truncf %80 : vector<8x8xf32> to vector<8x8xbf16>
    %cst_40 = arith.constant dense<0.000000e+00> : vector<8x8xf32>
    %82 = tpu.matmul %81, %67, %cst_40 {dimension_numbers = #tpu.dot_dimension_numbers<[1], [0], [0], [1], [0, 0, 1, 1], [], []>} : vector<8x8xbf16>, vector<8x8xbf16>, vector<8x8xf32> -> vector<8x8xf32>
    %83 = vector.extract_strided_slice %21 {offsets = [0, 24], sizes = [8, 8], strides = [1, 1]} : vector<8x32xbf16> to vector<8x8xbf16>
    %84 = vector.extract_strided_slice %22 {offsets = [0, 24], sizes = [8, 8], strides = [1, 1]} : vector<8x32xbf16> to vector<8x8xbf16>
    %85 = vector.extract_strided_slice %23 {offsets = [0, 24], sizes = [8, 8], strides = [1, 1]} : vector<8x32xbf16> to vector<8x8xbf16>
    %cst_41 = arith.constant dense<0.000000e+00> : vector<8x8xf32>
    %86 = tpu.matmul %83, %84, %cst_41 {dimension_numbers = #tpu.dot_dimension_numbers<[1], [1], [0], [0], [0, 0, 1, 0], [], []>} : vector<8x8xbf16>, vector<8x8xbf16>, vector<8x8xf32> -> vector<8x8xf32>
    %cst_42 = arith.constant -1.000000e+04 : f32
    %87 = vector.broadcast %cst_42 : f32 to vector<8x8xf32>
    %88 = arith.select %28, %87, %86 : vector<8x8xi1>, vector<8x8xf32>
    %cst_43 = arith.constant dense<0xFF800000> : vector<8xf32>
    %89 = vector.multi_reduction <maximumf>, %88, %cst_43 [1] : vector<8x8xf32> to vector<8xf32>
    %90 = vector.shape_cast %89 : vector<8xf32> to vector<8x1xf32>
    %91 = vector.broadcast %90 : vector<8x1xf32> to vector<8x8xf32>
    %92 = arith.subf %88, %91 : vector<8x8xf32>
    %93 = math.exp %92 : vector<8x8xf32>
    %cst_44 = arith.constant dense<0.000000e+00> : vector<8xf32>
    %94 = vector.multi_reduction <add>, %93, %cst_44 [1] : vector<8x8xf32> to vector<8xf32>
    %95 = vector.shape_cast %94 : vector<8xf32> to vector<8x1xf32>
    %96 = tpu.reciprocal %95 {approx = true} : vector<8x1xf32> -> vector<8x1xf32>
    %97 = vector.broadcast %96 : vector<8x1xf32> to vector<8x8xf32>
    %98 = arith.mulf %93, %97 : vector<8x8xf32>
    %99 = arith.truncf %98 : vector<8x8xf32> to vector<8x8xbf16>
    %cst_45 = arith.constant dense<0.000000e+00> : vector<8x8xf32>
    %100 = tpu.matmul %99, %85, %cst_45 {dimension_numbers = #tpu.dot_dimension_numbers<[1], [0], [0], [1], [0, 0, 1, 1], [], []>} : vector<8x8xbf16>, vector<8x8xbf16>, vector<8x8xf32> -> vector<8x8xf32>
    %101 = tpu.concatenate %46, %64, %82, %100 in 1 : vector<8x8xf32>, vector<8x8xf32>, vector<8x8xf32>, vector<8x8xf32> -> vector<8x32xf32>
    %102 = arith.truncf %101 : vector<8x32xf32> to vector<8x32xbf16>
    %c0_46 = arith.constant 0 : index
    %c0_47 = arith.constant 0 : index
    %103 = vector.load %arg12[%c0_46, %c0_47] : memref<32x32xbf16, #tpu.memory_space<vmem>>, vector<32x32xbf16>
    %cst_48 = arith.constant dense<0.000000e+00> : vector<8x32xf32>
    %104 = tpu.matmul %102, %103, %cst_48 {dimension_numbers = #tpu.dot_dimension_numbers<[1], [0], [0], [1], [0, 0, 1, 1], [], []>} : vector<8x32xbf16>, vector<32x32xbf16>, vector<8x32xf32> -> vector<8x32xf32>
    %c0_49 = arith.constant 0 : index
    %c0_50 = arith.constant 0 : index
    %105 = vector.load %arg13[%c0_49, %c0_50] : memref<1x32xf32, #tpu.memory_space<vmem>>, vector<1x32xf32>
    %106 = vector.broadcast %105 : vector<1x32xf32> to vector<8x32xf32>
    %107 = arith.addf %104, %106 : vector<8x32xf32>
    %108 = vector.shape_cast %107 : vector<8x32xf32> to vector<1x8x32xf32>
    %c0_51 = arith.constant 0 : index
    %c0_52 = arith.constant 0 : index
    %c0_53 = arith.constant 0 : index
    %109 = vector.load %arg14[%c0_51, %c0_52, %c0_53] : memref<1x8x32xf32, #tpu.memory_space<vmem>>, vector<1x8x32xf32>
    tpu.vector_store %arg14[%c0_51, %c0_52, %c0_53], %108 {strides = array<i32>} : memref<1x8x32xf32, #tpu.memory_space<vmem>>, vector<1x8x32xf32>,
    return
  }
  func.func @transform_0(%arg0: i32, %arg1: i32) -> (i32, i32, i32) {
    %c0_i32 = arith.constant 0 : i32
    %c0_i32_0 = arith.constant 0 : i32
    return %arg0, %arg1, %c0_i32 : i32, i32, i32
  }
  func.func @transform_1(%arg0: i32, %arg1: i32) -> (i32, i32, i32) {
    %c0_i32 = arith.constant 0 : i32
    %c0_i32_0 = arith.constant 0 : i32
    %c0_i32_1 = arith.constant 0 : i32
    return %arg0, %c0_i32, %c0_i32_0 : i32, i32, i32
  }
  func.func @transform_2(%arg0: i32, %arg1: i32) -> (i32, i32, i32) {
    %c0_i32 = arith.constant 0 : i32
    %c0_i32_0 = arith.constant 0 : i32
    %c0_i32_1 = arith.constant 0 : i32
    return %arg0, %c0_i32, %c0_i32_0 : i32, i32, i32
  }
  func.func @transform_3(%arg0: i32, %arg1: i32) -> (i32, i32, i32) {
    %c0_i32 = arith.constant 0 : i32
    %c0_i32_0 = arith.constant 0 : i32
    return %arg0, %arg1, %c0_i32 : i32, i32, i32
  }
  func.func @transform_4(%arg0: i32, %arg1: i32) -> (i32, i32) {
    %c0_i32 = arith.constant 0 : i32
    %c0_i32_0 = arith.constant 0 : i32
    %c0_i32_1 = arith.constant 0 : i32
    return %c0_i32, %c0_i32_0 : i32, i32
  }
  func.func @transform_5(%arg0: i32, %arg1: i32) -> (i32, i32) {
    %c0_i32 = arith.constant 0 : i32
    %c0_i32_0 = arith.constant 0 : i32
    %c0_i32_1 = arith.constant 0 : i32
    return %c0_i32, %c0_i32_0 : i32, i32
  }
  func.func @transform_6(%arg0: i32, %arg1: i32) -> (i32, i32) {
    %c0_i32 = arith.constant 0 : i32
    %c0_i32_0 = arith.constant 0 : i32
    %c0_i32_1 = arith.constant 0 : i32
    return %c0_i32, %c0_i32_0 : i32, i32
  }
  func.func @transform_7(%arg0: i32, %arg1: i32) -> (i32, i32) {
    %c0_i32 = arith.constant 0 : i32
    %c0_i32_0 = arith.constant 0 : i32
    %c0_i32_1 = arith.constant 0 : i32
    return %c0_i32, %c0_i32_0 : i32, i32
  }
  func.func @transform_8(%arg0: i32, %arg1: i32) -> (i32, i32) {
    %c0_i32 = arith.constant 0 : i32
    %c0_i32_0 = arith.constant 0 : i32
    %c0_i32_1 = arith.constant 0 : i32
    return %c0_i32, %c0_i32_0 : i32, i32
  }
  func.func @transform_9(%arg0: i32, %arg1: i32) -> (i32, i32) {
    %c0_i32 = arith.constant 0 : i32
    %c0_i32_0 = arith.constant 0 : i32
    %c0_i32_1 = arith.constant 0 : i32
    return %c0_i32, %c0_i32_0 : i32, i32
  }
  func.func @transform_10(%arg0: i32, %arg1: i32) -> (i32, i32) {
    %c0_i32 = arith.constant 0 : i32
    %c0_i32_0 = arith.constant 0 : i32
    %c0_i32_1 = arith.constant 0 : i32
    return %c0_i32, %c0_i32_0 : i32, i32
  }
  func.func @transform_11(%arg0: i32, %arg1: i32) -> (i32, i32) {
    %c0_i32 = arith.constant 0 : i32
    %c0_i32_0 = arith.constant 0 : i32
    %c0_i32_1 = arith.constant 0 : i32
    return %c0_i32, %c0_i32_0 : i32, i32
  }
  func.func @transform_12(%arg0: i32, %arg1: i32) -> (i32, i32, i32) {
    %c0_i32 = arith.constant 0 : i32
    %c0_i32_0 = arith.constant 0 : i32
    return %arg0, %arg1, %c0_i32 : i32, i32, i32
  }
}

</mosaic_0001>

<llo_original>
// kernel: tpu_custom_call.1
$region0: #{tpu_custom_call.1}
  #allocation0 [shape = 'u32[]', space=smem, size = 0x4, offset = 0x4, fixed_abs, tag = 'smem constant byte address 0x4 - core index']
  #allocation1 [shape = 'u32[144,128]{1,0:T(1,128)}', space=vmem, size = 0x12000, scoped, tag = 'internal scratch']
  %s0 = inlined_call_operand.hbm [shape: bf16[2,8,32], index: 0, kind: input, shape index: {}]
  %s1 = inlined_call_operand.hbm [shape: bf16[2,8,32], index: 1, kind: input, shape index: {}]
  %s2 = inlined_call_operand.hbm [shape: bf16[2,8,32], index: 2, kind: input, shape index: {}]
  %s3 = inlined_call_operand.hbm [shape: bf16[2,8,8], index: 3, kind: input, shape index: {}]
  %s4 = inlined_call_operand.hbm [shape: bf16[32,32], index: 4, kind: input, shape index: {}]
  %s5 = inlined_call_operand.vmem [shape: f32[1,32], index: 5, kind: input, shape index: {}]
  %s6 = inlined_call_operand.hbm [shape: bf16[32,32], index: 6, kind: input, shape index: {}]
  %s7 = inlined_call_operand.vmem [shape: f32[1,32], index: 7, kind: input, shape index: {}]
  %s8 = inlined_call_operand.hbm [shape: bf16[32,32], index: 8, kind: input, shape index: {}]
  %s9 = inlined_call_operand.hbm [shape: f32[1,32], index: 9, kind: input, shape index: {}]
  %s10 = inlined_call_operand.vmem [shape: bf16[32,32], index: 10, kind: input, shape index: {}]
  %s11 = inlined_call_operand.vmem [shape: f32[1,32], index: 11, kind: input, shape index: {}]
  %s12 = inlined_call_operand.hbm [shape: f32[2,8,32], index: 12, kind: output, shape index: {}]
  %s13 = sld [smem:[#allocation0]]
  $region113: #{tpu_custom_call.1} parent=0
    _
  %s15 = ssub.s32 1, %s13
  %s16 = scalar_select 0, %s15, %s13
  $region1: #{tpu_custom_call.1} parent=0
    #allocation2 [shape = 'u8[4096]{0}', space=vmem, size = 0x1000, scoped, tag = 'input window, operand 0']
    #allocation3 [shape = 's32[2]{0}', space=sflag, size = 0x8, scoped, tag = 'scoped memory for tpu_custom_call.1']
    #allocation4 [shape = 's32[2]{0}', space=sflag, size = 0x8, scoped, tag = 'scoped memory for tpu_custom_call.1']
    #allocation5 [shape = 'u8[4096]{0}', space=vmem, size = 0x1000, scoped, tag = 'input window, operand 1']
    #allocation6 [shape = 's32[2]{0}', space=sflag, size = 0x8, scoped, tag = 'scoped memory for tpu_custom_call.1']
    #allocation7 [shape = 'u8[4096]{0}', space=vmem, size = 0x1000, scoped, tag = 'input window, operand 2']
    #allocation8 [shape = 'u8[4096]{0}', space=vmem, size = 0x1000, scoped, tag = 'input window, operand 3']
    #allocation9 [shape = 's32[2]{0}', space=sflag, size = 0x8, scoped, tag = 'scoped memory for tpu_custom_call.1']
    #allocation10 [shape = 'u8[8192]{0}', space=vmem, size = 0x2000, scoped, tag = 'input window, operand 4, single buffered']
    #allocation11 [shape = 'u8[8192]{0}', space=vmem, size = 0x2000, scoped, tag = 'input window, operand 6, single buffered']
    #allocation12 [shape = 's32[1]{0}', space=sflag, size = 0x4, scoped, tag = 'scoped memory for tpu_custom_call.1']
    #allocation13 [shape = 'u8[8192]{0}', space=vmem, size = 0x2000, scoped, tag = 'input window, operand 8, single buffered']
    #allocation14 [shape = 'u8[512]{0}', space=vmem, size = 0x400, scoped, tag = 'input window, operand 9, single buffered']
    #allocation15 [shape = 's32[1]{0}', space=sflag, size = 0x4, scoped, tag = 'scoped memory for tpu_custom_call.1']
    #allocation16 [shape = 'u8[8192]{0}', space=vmem, size = 0x2000, scoped, tag = 'output window, operand 0']
    %17 = vsyncpa [#allocation3], 0
    %s18 = scalar_lea.sflag [#allocation3], 1
    %19 = vsyncpa %s18, 0
    %20 = vsyncpa [#allocation6], 0
    %s21 = scalar_lea.sflag [#allocation6], 1
    %22 = vsyncpa %s21, 0
    %23 = vsyncpa [#allocation9], 0
    %s24 = scalar_lea.sflag [#allocation9], 1
    %25 = vsyncpa %s24, 0
    %26 = vsyncpa [#allocation12], 0
    %27 = vsyncpa [#allocation15], 0
    %28 = vsyncpa [#allocation4], 0
    %s29 = scalar_lea.sflag [#allocation4], 1
    %30 = vsyncpa %s29, 0
    loop: start=0, step=1, limit=4
    $region2: #{tpu_custom_call.1} parent=1 // loop_pre_header
      _
    $region3: #{tpu_custom_call.1} parent=1 // loop_header
      %s32 = sphi 0, %s36
      %p33 = scmp.ge.s32.totalorder %s32, 4
      %s39 = sphi 0, %s51
      %s40 = sphi 0, %s47
      %s41 = sphi 0, %s39
      %s42 = sphi 0, %s40
      %s43 = sphi 0, %s41
      %s44 = sphi 0, %s42
      %s56 = sphi 0, %s58
      %s59 = sphi 0, %s56
      %s60 = sphi 0, %s59
      %s76 = sphi 0, %s60
      %s82 = sphi 0, %s84
      %s85 = sphi 0, %s82
      %s86 = sphi 0, %s85
      %s102 = sphi 0, %s86
      %s108 = sphi 0, %s110
      %s111 = sphi 0, %s108
      %s112 = sphi 0, %s111
      %s128 = sphi 0, %s112
      %s136 = sphi 0, %s138
      %s139 = sphi 0, %s136
      %s140 = sphi 0, %s139
      %s156 = sphi 0, %s140
      %s160 = sphi 0, %s160
      %s162 = sphi 0, %s160
      %s163 = sphi 0, %s162
      %s177 = sphi 0, %s163
      %s181 = sphi 0, %s181
      %s183 = sphi 0, %s181
      %s184 = sphi 0, %s183
      %s198 = sphi 0, %s184
      %s202 = sphi 0, %s202
      %s204 = sphi 0, %s202
      %s205 = sphi 0, %s204
      %s219 = sphi 0, %s205
      %s223 = sphi 0, %s223
      %s225 = sphi 0, %s223
      %s226 = sphi 0, %s225
      %s240 = sphi 0, %s226
      %s244 = sphi 0, %s244
      %s246 = sphi 0, %s244
      %s247 = sphi 0, %s246
      %s261 = sphi 0, %s247
      %s265 = sphi 0, %s265
      %s267 = sphi 0, %s265
      %s268 = sphi 0, %s267
      %s282 = sphi 0, %s268
      %s286 = sphi 0, %s286
      %s288 = sphi 0, %s286
      %s289 = sphi 0, %s288
      %s303 = sphi 0, %s289
      %s307 = sphi 0, %s307
      %s309 = sphi 0, %s307
      %s310 = sphi 0, %s309
      %s324 = sphi 0, %s310
      %s332 = sphi 0, %s334
      %s335 = sphi 0, %s332
      %s336 = sphi 0, %s335
      %s352 = sphi 0, %s336
    $region4: #{tpu_custom_call.1} parent=1 // loop_header_branch
      %35 = sbr.rel (%p33) target = $region8
    $region5: #{tpu_custom_call.1} parent=1 // loop_body
      %s37 = ssub.s32 %s32, 1
      %s38 = ssub.s32 %s32, 2
      %s45 = sadd.s32 1, %s40
      %p46 = scmp.ge.s32.totalorder %s45, 1
      %s47 = scalar_select %p46, 0, %s45
      %s48 = sadd.s32 1, %s39
      %s49 = scalar_select %p46, %s48, %s39
      %p50 = scmp.ge.s32.totalorder %s49, 2
      %s51 = scalar_select %p50, 0, %s49
      %s52 = ssub.s32 %s39, %s51
      %s53 = ssub.s32 %s40, %s47
      %s54 = sor.u32 %s52, %s53
      %p55 = scmp.eq.s32.totalorder %s54, 0
      %s57 = sadd.s32 %s56, 1
      %s58 = scalar_select %p55, %s56, %s57
      %p61 = pneg %p55
      %p62 = scmp.eq.s32.totalorder %s32, 1
      %p63 = por %p61, %p62
      %p64 = scmp.ne.s32.totalorder %s56, %s59
      %p65 = scmp.eq.s32.totalorder %s32, 0
      %p66 = por %p64, %p65
      %p67 = scmp.ne.s32.totalorder %s56, %s59
      %p68 = scmp.eq.s32.totalorder %s37, 1
      %p69 = por %p67, %p68
      %p70 = scmp.ne.s32.totalorder %s59, %s60
      %p71 = scmp.eq.s32.totalorder %s37, 0
      %p72 = por %p70, %p71
      %p73 = scmp.ne.s32.totalorder %s59, %s60
      %p74 = scmp.eq.s32.totalorder %s38, 1
      %p75 = por %p73, %p74
      %p77 = scmp.ne.s32.totalorder %s60, %s76
      %p78 = scmp.eq.s32.totalorder %s38, 0
      %p79 = por %p77, %p78
      %s80 = ssub.s32 %s39, %s51
      %p81 = scmp.eq.s32.totalorder %s80, 0
      %s83 = sadd.s32 %s82, 1
      %s84 = scalar_select %p81, %s82, %s83
      %p87 = pneg %p81
      %p88 = scmp.eq.s32.totalorder %s32, 1
      %p89 = por %p87, %p88
      %p90 = scmp.ne.s32.totalorder %s82, %s85
      %p91 = scmp.eq.s32.totalorder %s32, 0
      %p92 = por %p90, %p91
      %p93 = scmp.ne.s32.totalorder %s82, %s85
      %p94 = scmp.eq.s32.totalorder %s37, 1
      %p95 = por %p93, %p94
      %p96 = scmp.ne.s32.totalorder %s85, %s86
      %p97 = scmp.eq.s32.totalorder %s37, 0
      %p98 = por %p96, %p97
      %p99 = scmp.ne.s32.totalorder %s85, %s86
      %p100 = scmp.eq.s32.totalorder %s38, 1
      %p101 = por %p99, %p100
      %p103 = scmp.ne.s32.totalorder %s86, %s102
      %p104 = scmp.eq.s32.totalorder %s38, 0
      %p105 = por %p103, %p104
      %s106 = ssub.s32 %s39, %s51
      %p107 = scmp.eq.s32.totalorder %s106, 0
      %s109 = sadd.s32 %s108, 1
      %s110 = scalar_select %p107, %s108, %s109
      %p113 = pneg %p107
      %p114 = scmp.eq.s32.totalorder %s32, 1
      %p115 = por %p113, %p114
      %p116 = scmp.ne.s32.totalorder %s108, %s111
      %p117 = scmp.eq.s32.totalorder %s32, 0
      %p118 = por %p116, %p117
      %p119 = scmp.ne.s32.totalorder %s108, %s111
      %p120 = scmp.eq.s32.totalorder %s37, 1
      %p121 = por %p119, %p120
      %p122 = scmp.ne.s32.totalorder %s111, %s112
      %p123 = scmp.eq.s32.totalorder %s37, 0
      %p124 = por %p122, %p123
      %p125 = scmp.ne.s32.totalorder %s111, %s112
      %p126 = scmp.eq.s32.totalorder %s38, 1
      %p127 = por %p125, %p126
      %p129 = scmp.ne.s32.totalorder %s112, %s128
      %p130 = scmp.eq.s32.totalorder %s38, 0
      %p131 = por %p129, %p130
      %s132 = ssub.s32 %s39, %s51
      %s133 = ssub.s32 %s40, %s47
      %s134 = sor.u32 %s132, %s133
      %p135 = scmp.eq.s32.totalorder %s134, 0
      %s137 = sadd.s32 %s136, 1
      %s138 = scalar_select %p135, %s136, %s137
      %p141 = pneg %p135
      %p142 = scmp.eq.s32.totalorder %s32, 1
      %p143 = por %p141, %p142
      %p144 = scmp.ne.s32.totalorder %s136, %s139
      %p145 = scmp.eq.s32.totalorder %s32, 0
      %p146 = por %p144, %p145
      %p147 = scmp.ne.s32.totalorder %s136, %s139
      %p148 = scmp.eq.s32.totalorder %s37, 1
      %p149 = por %p147, %p148
      %p150 = scmp.ne.s32.totalorder %s139, %s140
      %p151 = scmp.eq.s32.totalorder %s37, 0
      %p152 = por %p150, %p151
      %p153 = scmp.ne.s32.totalorder %s139, %s140
      %p154 = scmp.eq.s32.totalorder %s38, 1
      %p155 = por %p153, %p154
      %p157 = scmp.ne.s32.totalorder %s140, %s156
      %p158 = scmp.eq.s32.totalorder %s38, 0
      %p159 = por %p157, %p158
      %s161 = sadd.s32 %s160, 1
      %p164 = scmp.eq.s32.totalorder %s32, 1
      %p165 = scmp.ne.s32.totalorder %s160, %s162
      %p166 = scmp.eq.s32.totalorder %s32, 0
      %p167 = por %p165, %p166
      %p168 = scmp.ne.s32.totalorder %s160, %s162
      %p169 = scmp.eq.s32.totalorder %s37, 1
      %p170 = por %p168, %p169
      %p171 = scmp.ne.s32.totalorder %s162, %s163
      %p172 = scmp.eq.s32.totalorder %s37, 0
      %p173 = por %p171, %p172
      %p174 = scmp.ne.s32.totalorder %s162, %s163
      %p175 = scmp.eq.s32.totalorder %s38, 1
      %p176 = por %p174, %p175
      %p178 = scmp.ne.s32.totalorder %s163, %s177
      %p179 = scmp.eq.s32.totalorder %s38, 0
      %p180 = por %p178, %p179
      %s182 = sadd.s32 %s181, 1
      %p185 = scmp.eq.s32.totalorder %s32, 1
      %p186 = scmp.ne.s32.totalorder %s181, %s183
      %p187 = scmp.eq.s32.totalorder %s32, 0
      %p188 = por %p186, %p187
      %p189 = scmp.ne.s32.totalorder %s181, %s183
      %p190 = scmp.eq.s32.totalorder %s37, 1
      %p191 = por %p189, %p190
      %p192 = scmp.ne.s32.totalorder %s183, %s184
      %p193 = scmp.eq.s32.totalorder %s37, 0
      %p194 = por %p192, %p193
      %p195 = scmp.ne.s32.totalorder %s183, %s184
      %p196 = scmp.eq.s32.totalorder %s38, 1
      %p197 = por %p195, %p196
      %p199 = scmp.ne.s32.totalorder %s184, %s198
      %p200 = scmp.eq.s32.totalorder %s38, 0
      %p201 = por %p199, %p200
      %s203 = sadd.s32 %s202, 1
      %p206 = scmp.eq.s32.totalorder %s32, 1
      %p207 = scmp.ne.s32.totalorder %s202, %s204
      %p208 = scmp.eq.s32.totalorder %s32, 0
      %p209 = por %p207, %p208
      %p210 = scmp.ne.s32.totalorder %s202, %s204
      %p211 = scmp.eq.s32.totalorder %s37, 1
      %p212 = por %p210, %p211
      %p213 = scmp.ne.s32.totalorder %s204, %s205
      %p214 = scmp.eq.s32.totalorder %s37, 0
      %p215 = por %p213, %p214
      %p216 = scmp.ne.s32.totalorder %s204, %s205
      %p217 = scmp.eq.s32.totalorder %s38, 1
      %p218 = por %p216, %p217
      %p220 = scmp.ne.s32.totalorder %s205, %s219
      %p221 = scmp.eq.s32.totalorder %s38, 0
      %p222 = por %p220, %p221
      %s224 = sadd.s32 %s223, 1
      %p227 = scmp.eq.s32.totalorder %s32, 1
      %p228 = scmp.ne.s32.totalorder %s223, %s225
      %p229 = scmp.eq.s32.totalorder %s32, 0
      %p230 = por %p228, %p229
      %p231 = scmp.ne.s32.totalorder %s223, %s225
      %p232 = scmp.eq.s32.totalorder %s37, 1
      %p233 = por %p231, %p232
      %p234 = scmp.ne.s32.totalorder %s225, %s226
      %p235 = scmp.eq.s32.totalorder %s37, 0
      %p236 = por %p234, %p235
      %p237 = scmp.ne.s32.totalorder %s225, %s226
      %p238 = scmp.eq.s32.totalorder %s38, 1
      %p239 = por %p237, %p238
      %p241 = scmp.ne.s32.totalorder %s226, %s240
      %p242 = scmp.eq.s32.totalorder %s38, 0
      %p243 = por %p241, %p242
      %s245 = sadd.s32 %s244, 1
      %p248 = scmp.eq.s32.totalorder %s32, 1
      %p249 = scmp.ne.s32.totalorder %s244, %s246
      %p250 = scmp.eq.s32.totalorder %s32, 0
      %p251 = por %p249, %p250
      %p252 = scmp.ne.s32.totalorder %s244, %s246
      %p253 = scmp.eq.s32.totalorder %s37, 1
      %p254 = por %p252, %p253
      %p255 = scmp.ne.s32.totalorder %s246, %s247
      %p256 = scmp.eq.s32.totalorder %s37, 0
      %p257 = por %p255, %p256
      %p258 = scmp.ne.s32.totalorder %s246, %s247
      %p259 = scmp.eq.s32.totalorder %s38, 1
      %p260 = por %p258, %p259
      %p262 = scmp.ne.s32.totalorder %s247, %s261
      %p263 = scmp.eq.s32.totalorder %s38, 0
      %p264 = por %p262, %p263
      %s266 = sadd.s32 %s265, 1
      %p269 = scmp.eq.s32.totalorder %s32, 1
      %p270 = scmp.ne.s32.totalorder %s265, %s267
      %p271 = scmp.eq.s32.totalorder %s32, 0
      %p272 = por %p270, %p271
      %p273 = scmp.ne.s32.totalorder %s265, %s267
      %p274 = scmp.eq.s32.totalorder %s37, 1
      %p275 = por %p273, %p274
      %p276 = scmp.ne.s32.totalorder %s267, %s268
      %p277 = scmp.eq.s32.totalorder %s37, 0
      %p278 = por %p276, %p277
      %p279 = scmp.ne.s32.totalorder %s267, %s268
      %p280 = scmp.eq.s32.totalorder %s38, 1
      %p281 = por %p279, %p280
      %p283 = scmp.ne.s32.totalorder %s268, %s282
      %p284 = scmp.eq.s32.totalorder %s38, 0
      %p285 = por %p283, %p284
      %s287 = sadd.s32 %s286, 1
      %p290 = scmp.eq.s32.totalorder %s32, 1
      %p291 = scmp.ne.s32.totalorder %s286, %s288
      %p292 = scmp.eq.s32.totalorder %s32, 0
      %p293 = por %p291, %p292
      %p294 = scmp.ne.s32.totalorder %s286, %s288
      %p295 = scmp.eq.s32.totalorder %s37, 1
      %p296 = por %p294, %p295
      %p297 = scmp.ne.s32.totalorder %s288, %s289
      %p298 = scmp.eq.s32.totalorder %s37, 0
      %p299 = por %p297, %p298
      %p300 = scmp.ne.s32.totalorder %s288, %s289
      %p301 = scmp.eq.s32.totalorder %s38, 1
      %p302 = por %p300, %p301
      %p304 = scmp.ne.s32.totalorder %s289, %s303
      %p305 = scmp.eq.s32.totalorder %s38, 0
      %p306 = por %p304, %p305
      %s308 = sadd.s32 %s307, 1
      %p311 = scmp.eq.s32.totalorder %s32, 1
      %p312 = scmp.ne.s32.totalorder %s307, %s309
      %p313 = scmp.eq.s32.totalorder %s32, 0
      %p314 = por %p312, %p313
      %p315 = scmp.ne.s32.totalorder %s307, %s309
      %p316 = scmp.eq.s32.totalorder %s37, 1
      %p317 = por %p315, %p316
      %p318 = scmp.ne.s32.totalorder %s309, %s310
      %p319 = scmp.eq.s32.totalorder %s37, 0
      %p320 = por %p318, %p319
      %p321 = scmp.ne.s32.totalorder %s309, %s310
      %p322 = scmp.eq.s32.totalorder %s38, 1
      %p323 = por %p321, %p322
      %p325 = scmp.ne.s32.totalorder %s310, %s324
      %p326 = scmp.eq.s32.totalorder %s38, 0
      %p327 = por %p325, %p326
      %s328 = ssub.s32 %s39, %s51
      %s329 = ssub.s32 %s40, %s47
      %s330 = sor.u32 %s328, %s329
      %p331 = scmp.eq.s32.totalorder %s330, 0
      %s333 = sadd.s32 %s332, 1
      %s334 = scalar_select %p331, %s332, %s333
      %p337 = pneg %p331
      %p338 = scmp.eq.s32.totalorder %s32, 1
      %p339 = por %p337, %p338
      %p340 = scmp.ne.s32.totalorder %s332, %s335
      %p341 = scmp.eq.s32.totalorder %s32, 0
      %p342 = por %p340, %p341
      %p343 = scmp.ne.s32.totalorder %s332, %s335
      %p344 = scmp.eq.s32.totalorder %s37, 1
      %p345 = por %p343, %p344
      %p346 = scmp.ne.s32.totalorder %s335, %s336
      %p347 = scmp.eq.s32.totalorder %s37, 0
      %p348 = por %p346, %p347
      %p349 = scmp.ne.s32.totalorder %s335, %s336
      %p350 = scmp.eq.s32.totalorder %s38, 1
      %p351 = por %p349, %p350
      %p353 = scmp.ne.s32.totalorder %s336, %s352
      %p354 = scmp.eq.s32.totalorder %s38, 0
      %p355 = por %p353, %p354
      %p356 = scmp.le.s32.totalorder 1, %s32
      %p357 = scmp.lt.s32.totalorder %s32, 3
      %p358 = pnand %p356, %p357
      %p359 = pneg %p358
      // Predicated region
      $region9: #{tpu_custom_call.1} parent=5 // pred_check
        _
      $region10: #{tpu_custom_call.1} parent=5 // pred_check_branch
        %361 = sbr.rel (%p358) target = $region12
      $region11: #{tpu_custom_call.1} parent=5 // pred_region
        %s362 = ssub.s32 %s32, 1
        // Predicated region
        $region13: #{tpu_custom_call.1} parent=11 // pred_check
          %p363 = pneg %p173
        $region14: #{tpu_custom_call.1} parent=11 // pred_check_branch
          %365 = sbr.rel (%p363) target = $region16
        $region15: #{tpu_custom_call.1} parent=11 // pred_region
          %s367 = ssub.s32 256, 256
          %368 = vsyncadd [#allocation9], %s367
          %s369 = sshll.u32 [#allocation10], 4
          %s370 = int_to_ptr.vmem [resolvable:$true] %s369
          %375 = dma.hbm_to_vmem [thread:$0]  %s4, 256, %s370, [#allocation9], 64, 64, 4
        $region16: #{tpu_custom_call.1} parent=11 // pred_fallthru
          _
        // Predicated region
        $region17: #{tpu_custom_call.1} parent=11 // pred_check
          %p376 = pneg %p194
        $region18: #{tpu_custom_call.1} parent=11 // pred_check_branch
          %378 = sbr.rel (%p376) target = $region20
        $region19: #{tpu_custom_call.1} parent=11 // pred_region
          _
        $region20: #{tpu_custom_call.1} parent=11 // pred_fallthru
          _
        // Predicated region
        $region21: #{tpu_custom_call.1} parent=11 // pred_check
          %p379 = pneg %p215
        $region22: #{tpu_custom_call.1} parent=11 // pred_check_branch
          %381 = sbr.rel (%p379) target = $region24
        $region23: #{tpu_custom_call.1} parent=11 // pred_region
          %s383 = ssub.s32 256, 256
          %384 = vsyncadd [#allocation12], %s383
          %s385 = sshll.u32 [#allocation11], 4
          %s386 = int_to_ptr.vmem [resolvable:$true] %s385
          %391 = dma.hbm_to_vmem [thread:$0]  %s6, 256, %s386, [#allocation12], 64, 64, 4
        $region24: #{tpu_custom_call.1} parent=11 // pred_fallthru
          _
        // Predicated region
        $region25: #{tpu_custom_call.1} parent=11 // pred_check
          %p392 = pneg %p236
        $region26: #{tpu_custom_call.1} parent=11 // pred_check_branch
          %394 = sbr.rel (%p392) target = $region28
        $region27: #{tpu_custom_call.1} parent=11 // pred_region
          _
        $region28: #{tpu_custom_call.1} parent=11 // pred_fallthru
          _
        // Predicated region
        $region29: #{tpu_custom_call.1} parent=11 // pred_check
          %p395 = pneg %p257
        $region30: #{tpu_custom_call.1} parent=11 // pred_check_branch
          %397 = sbr.rel (%p395) target = $region32
        $region31: #{tpu_custom_call.1} parent=11 // pred_region
          %s399 = ssub.s32 256, 256
          %400 = vsyncadd [#allocation12], %s399
          %s401 = sshll.u32 [#allocation13], 4
          %s402 = int_to_ptr.vmem [resolvable:$true] %s401
          %407 = dma.hbm_to_vmem [thread:$0]  %s8, 256, %s402, [#allocation12], 64, 64, 4
        $region32: #{tpu_custom_call.1} parent=11 // pred_fallthru
          _
        // Predicated region
        $region33: #{tpu_custom_call.1} parent=11 // pred_check
          %p408 = pneg %p278
        $region34: #{tpu_custom_call.1} parent=11 // pred_check_branch
          %410 = sbr.rel (%p408) target = $region36
        $region35: #{tpu_custom_call.1} parent=11 // pred_region
          %s412 = ssub.s32 16, 16
          %413 = vsyncadd [#allocation15], %s412
          %s415 = sshll.u32 [#allocation14], 4
          %s416 = int_to_ptr.vmem [resolvable:$true] %s415
          %418 = dma.hbm_to_vmem [thread:$0]  %s9, 16, %s416, [#allocation15]
        $region36: #{tpu_custom_call.1} parent=11 // pred_fallthru
          _
        // Predicated region
        $region37: #{tpu_custom_call.1} parent=11 // pred_check
          %p419 = pneg %p299
        $region38: #{tpu_custom_call.1} parent=11 // pred_check_branch
          %421 = sbr.rel (%p419) target = $region40
        $region39: #{tpu_custom_call.1} parent=11 // pred_region
          _
        $region40: #{tpu_custom_call.1} parent=11 // pred_fallthru
          _
        // Predicated region
        $region41: #{tpu_custom_call.1} parent=11 // pred_check
          %p422 = pneg %p320
        $region42: #{tpu_custom_call.1} parent=11 // pred_check_branch
          %424 = sbr.rel (%p422) target = $region44
        $region43: #{tpu_custom_call.1} parent=11 // pred_region
          _
        $region44: #{tpu_custom_call.1} parent=11 // pred_fallthru
          _
      $region12: #{tpu_custom_call.1} parent=5 // pred_fallthru
        _
      %p425 = scmp.lt.s32.totalorder %s32, 2
      // Predicated region
      $region45: #{tpu_custom_call.1} parent=5 // pred_check
        %p426 = pneg %p425
      $region46: #{tpu_custom_call.1} parent=5 // pred_check_branch
        %428 = sbr.rel (%p426) target = $region48
      $region47: #{tpu_custom_call.1} parent=5 // pred_region
        // Predicated region
        $region49: #{tpu_custom_call.1} parent=47 // pred_check
          %p429 = pneg %p66
        $region50: #{tpu_custom_call.1} parent=47 // pred_check_branch
          %431 = sbr.rel (%p429) target = $region52
        $region51: #{tpu_custom_call.1} parent=47 // pred_region
          %s432 = sand.u32 %s56, 1
          %s433 = scalar_lea.sflag [#allocation3], %s432
          %s434 = sand.u32 %s56, 1
          %s435 = smul.addr %s434, 4
          %s436 = scalar_lea.vmem [#allocation2], %s435
          %s438 = ssub.s32 64, 64
          %439 = vsyncadd %s433, %s438
          %s440 = sadd.s32 %s40, %s39
          %s441 = smul.addr %s440, 64
          %s442 = scalar_lea.hbm %s0, %s441
          %s444 = sshll.u32 %s436, 4
          %s445 = int_to_ptr.vmem [resolvable:$true] %s444
          %447 = dma.hbm_to_vmem [thread:$0]  %s442, 64, %s445, %s433
        $region52: #{tpu_custom_call.1} parent=47 // pred_fallthru
          _
        // Predicated region
        $region53: #{tpu_custom_call.1} parent=47 // pred_check
          %p448 = pneg %p92
        $region54: #{tpu_custom_call.1} parent=47 // pred_check_branch
          %450 = sbr.rel (%p448) target = $region56
        $region55: #{tpu_custom_call.1} parent=47 // pred_region
          %s451 = sand.u32 %s32, 1
          %s452 = scalar_lea.sflag [#allocation6], %s451
          %s453 = sand.u32 %s82, 1
          %s454 = smul.addr %s453, 4
          %s455 = scalar_lea.vmem [#allocation5], %s454
          %s457 = ssub.s32 64, 64
          %458 = vsyncadd %s452, %s457
          %s459 = smul.addr %s39, 64
          %s460 = scalar_lea.hbm %s1, %s459
          %s462 = sshll.u32 %s455, 4
          %s463 = int_to_ptr.vmem [resolvable:$true] %s462
          %465 = dma.hbm_to_vmem [thread:$0]  %s460, 64, %s463, %s452
        $region56: #{tpu_custom_call.1} parent=47 // pred_fallthru
          _
        // Predicated region
        $region57: #{tpu_custom_call.1} parent=47 // pred_check
          %p466 = pneg %p118
        $region58: #{tpu_custom_call.1} parent=47 // pred_check_branch
          %468 = sbr.rel (%p466) target = $region60
        $region59: #{tpu_custom_call.1} parent=47 // pred_region
          %s469 = sand.u32 %s32, 1
          %s470 = scalar_lea.sflag [#allocation6], %s469
          %s471 = sand.u32 %s108, 1
          %s472 = smul.addr %s471, 4
          %s473 = scalar_lea.vmem [#allocation7], %s472
          %s475 = ssub.s32 64, 64
          %476 = vsyncadd %s470, %s475
          %s477 = smul.addr %s39, 64
          %s478 = scalar_lea.hbm %s2, %s477
          %s480 = sshll.u32 %s473, 4
          %s481 = int_to_ptr.vmem [resolvable:$true] %s480
          %483 = dma.hbm_to_vmem [thread:$0]  %s478, 64, %s481, %s470
        $region60: #{tpu_custom_call.1} parent=47 // pred_fallthru
          _
        // Predicated region
        $region61: #{tpu_custom_call.1} parent=47 // pred_check
          %p484 = pneg %p146
        $region62: #{tpu_custom_call.1} parent=47 // pred_check_branch
          %486 = sbr.rel (%p484) target = $region64
        $region63: #{tpu_custom_call.1} parent=47 // pred_region
          %s487 = sand.u32 %s32, 1
          %s488 = scalar_lea.sflag [#allocation9], %s487
          %s489 = sand.u32 %s136, 1
          %s490 = smul.addr %s489, 4
          %s491 = scalar_lea.vmem [#allocation8], %s490
          %s493 = ssub.s32 64, 64
          %494 = vsyncadd %s488, %s493
          %s495 = sadd.s32 %s40, %s39
          %s496 = smul.addr %s495, 64
          %s497 = scalar_lea.hbm %s3, %s496
          %s499 = sshll.u32 %s491, 4
          %s500 = int_to_ptr.vmem [resolvable:$true] %s499
          %502 = dma.hbm_to_vmem [thread:$0]  %s497, 64, %s500, %s488
        $region64: #{tpu_custom_call.1} parent=47 // pred_fallthru
          _
      $region48: #{tpu_custom_call.1} parent=5 // pred_fallthru
        _
      %p503 = scmp.le.s32.totalorder 1, %s32
      %p504 = scmp.lt.s32.totalorder %s32, 3
      %p505 = pnand %p503, %p504
      %p506 = pneg %p505
      // Predicated region
      $region65: #{tpu_custom_call.1} parent=5 // pred_check
        _
      $region66: #{tpu_custom_call.1} parent=5 // pred_check_branch
        %508 = sbr.rel (%p505) target = $region68
      $region67: #{tpu_custom_call.1} parent=5 // pred_region
        %s509 = ssub.s32 %s32, 1
        %s510 = sand.u32 %s59, 1
        %s511 = scalar_lea.sflag [#allocation3], %s510
        %s512 = sand.u32 %s59, 1
        %s513 = smul.addr %s512, 4
        %s514 = scalar_lea.vmem [#allocation2], %s513
        // Predicated region
        $region69: #{tpu_custom_call.1} parent=67 // pred_check
          %p515 = pneg %p72
        $region70: #{tpu_custom_call.1} parent=67 // pred_check_branch
          %517 = sbr.rel (%p515) target = $region72
        $region71: #{tpu_custom_call.1} parent=67 // pred_region
          %518 = dma.done %s511, 64
        $region72: #{tpu_custom_call.1} parent=67 // pred_fallthru
          _
        %s519 = sand.u32 %s37, 1
        %s520 = scalar_lea.sflag [#allocation6], %s519
        %s521 = sand.u32 %s85, 1
        %s522 = smul.addr %s521, 4
        %s523 = scalar_lea.vmem [#allocation5], %s522
        // Predicated region
        $region73: #{tpu_custom_call.1} parent=67 // pred_check
          %p524 = pneg %p98
        $region74: #{tpu_custom_call.1} parent=67 // pred_check_branch
          %526 = sbr.rel (%p524) target = $region76
        $region75: #{tpu_custom_call.1} parent=67 // pred_region
          %527 = dma.done %s520, 64
        $region76: #{tpu_custom_call.1} parent=67 // pred_fallthru
          _
        %s528 = sand.u32 %s37, 1
        %s529 = scalar_lea.sflag [#allocation6], %s528
        %s530 = sand.u32 %s111, 1
        %s531 = smul.addr %s530, 4
        %s532 = scalar_lea.vmem [#allocation7], %s531
        // Predicated region
        $region77: #{tpu_custom_call.1} parent=67 // pred_check
          %p533 = pneg %p124
        $region78: #{tpu_custom_call.1} parent=67 // pred_check_branch
          %535 = sbr.rel (%p533) target = $region80
        $region79: #{tpu_custom_call.1} parent=67 // pred_region
          %536 = dma.done %s529, 64
        $region80: #{tpu_custom_call.1} parent=67 // pred_fallthru
          _
        %s537 = sand.u32 %s37, 1
        %s538 = scalar_lea.sflag [#allocation9], %s537
        %s539 = sand.u32 %s139, 1
        %s540 = smul.addr %s539, 4
        %s541 = scalar_lea.vmem [#allocation8], %s540
        // Predicated region
        $region81: #{tpu_custom_call.1} parent=67 // pred_check
          %p542 = pneg %p152
        $region82: #{tpu_custom_call.1} parent=67 // pred_check_branch
          %544 = sbr.rel (%p542) target = $region84
        $region83: #{tpu_custom_call.1} parent=67 // pred_region
          %545 = dma.done %s538, 64
        $region84: #{tpu_custom_call.1} parent=67 // pred_fallthru
          _
        // Predicated region
        $region85: #{tpu_custom_call.1} parent=67 // pred_check
          %p546 = pneg %p173
        $region86: #{tpu_custom_call.1} parent=67 // pred_check_branch
          %548 = sbr.rel (%p546) target = $region88
        $region87: #{tpu_custom_call.1} parent=67 // pred_region
          %549 = dma.done [#allocation9], 256
        $region88: #{tpu_custom_call.1} parent=67 // pred_fallthru
          _
        // Predicated region
        $region89: #{tpu_custom_call.1} parent=67 // pred_check
          %p550 = pneg %p215
        $region90: #{tpu_custom_call.1} parent=67 // pred_check_branch
          %552 = sbr.rel (%p550) target = $region92
        $region91: #{tpu_custom_call.1} parent=67 // pred_region
          %553 = dma.done [#allocation12], 256
        $region92: #{tpu_custom_call.1} parent=67 // pred_fallthru
          _
        // Predicated region
        $region93: #{tpu_custom_call.1} parent=67 // pred_check
          %p554 = pneg %p257
        $region94: #{tpu_custom_call.1} parent=67 // pred_check_branch
          %556 = sbr.rel (%p554) target = $region96
        $region95: #{tpu_custom_call.1} parent=67 // pred_region
          %557 = dma.done [#allocation12], 256
        $region96: #{tpu_custom_call.1} parent=67 // pred_fallthru
          _
        // Predicated region
        $region97: #{tpu_custom_call.1} parent=67 // pred_check
          %p558 = pneg %p278
        $region98: #{tpu_custom_call.1} parent=67 // pred_check_branch
          %560 = sbr.rel (%p558) target = $region100
        $region99: #{tpu_custom_call.1} parent=67 // pred_region
          %561 = dma.done [#allocation15], 16
        $region100: #{tpu_custom_call.1} parent=67 // pred_fallthru
          _
        %s562 = sand.u32 %s59, 1
        %s563 = scalar_lea.sflag [#allocation3], %s562
        %s564 = sand.u32 %s59, 1
        %s565 = smul.addr %s564, 4
        %s566 = scalar_lea.vmem [#allocation2], %s565
        %p567 = pneg %p72
        %p568 = pneg %p69
        %s569 = sand.u32 %s37, 1
        %s570 = scalar_lea.sflag [#allocation6], %s569
        %s571 = sand.u32 %s85, 1
        %s572 = smul.addr %s571, 4
        %s573 = scalar_lea.vmem [#allocation5], %s572
        %p574 = pneg %p98
        %p575 = pneg %p95
        %s576 = sand.u32 %s37, 1
        %s577 = scalar_lea.sflag [#allocation6], %s576
        %s578 = sand.u32 %s111, 1
        %s579 = smul.addr %s578, 4
        %s580 = scalar_lea.vmem [#allocation7], %s579
        %p581 = pneg %p124
        %p582 = pneg %p121
        %s583 = sand.u32 %s37, 1
        %s584 = scalar_lea.sflag [#allocation9], %s583
        %s585 = sand.u32 %s139, 1
        %s586 = smul.addr %s585, 4
        %s587 = scalar_lea.vmem [#allocation8], %s586
        %p588 = pneg %p152
        %p589 = pneg %p149
        %p590 = pneg %p173
        %p591 = pneg %p170
        %p592 = pneg %p194
        %p593 = pneg %p191
        %p594 = pneg %p215
        %p595 = pneg %p212
        %p596 = pneg %p236
        %p597 = pneg %p233
        %p598 = pneg %p257
        %p599 = pneg %p254
        %p600 = pneg %p278
        %p601 = pneg %p275
        %p602 = pneg %p299
        %p603 = pneg %p296
        %p604 = pneg %p320
        %p605 = pneg %p317
        %p606 = pneg %p348
        %p607 = pneg %p345
        %s608 = sand.u32 %s335, 1
        %s609 = scalar_lea.sflag [#allocation4], %s608
        %s610 = sand.u32 %s335, 1
        %s611 = smul.addr %s610, 8
        %s612 = scalar_lea.vmem [#allocation16], %s611
        %v614 = vld [vmem:[%s514] sm:$0xf]
        %v615 = vld [vmem:[%s523] sm:$0xf]
        %v616 = vld [vmem:[%s532] sm:$0xf]
        %v617 = vld [vmem:[#allocation10] sm:$0xf]
        %v618 = vld [vmem:[#allocation10 + $0x4] sm:$0xf]
        %v619 = vld [vmem:[#allocation10 + $0x8] sm:$0xf]
        %v620 = vld [vmem:[#allocation10 + $0xc] sm:$0xf]
        %v621 = vld [vmem:[%s5] sm:$0x1]
        %v623 = vlaneseq
        %v624 = vshrl.u32 %v623, 7
        %v625 = vsub.s32 0, %v624
        %v626 = vrot.slane %v621, %v625
        %v632 = vunpack.c.l.b16 %v617
        %v633 = vunpack.c.l.b16 %v618
        %v634 = vunpack.c.l.b16 %v619
        %v635 = vunpack.c.l.b16 %v620
        %v636 = vpack.c.b16 %v633, %v632
        %v637 = vpack.c.b16 %v635, %v634
        %vm640 = vcmask 261120
        %v642 = vsel %vm640, %v614, 0
        %644 = vmatprep.subr.bf16.mxu0 0
        %645 = vmatpush1.bf16.msra.mxu0 0
        %646 = vmatprep.subr.bf16.mxu0 0
        %647 = vmatpush1.bf16.msra.mxu0 0
        %648 = vmatprep.subr.bf16.mxu0 0
        %649 = vmatpush1.bf16.msra.mxu0 0
        %650 = vmatprep.subr.bf16.mxu0 0
        %651 = vmatpush1.bf16.msra.mxu0 0
        %652 = vmatprep.subr.bf16.mxu0 0
        %653 = vmatpush1.bf16.msra.mxu0 0
        %654 = vmatprep.subr.bf16.mxu0 0
        %655 = vmatpush1.bf16.msra.mxu0 0
        %656 = vmatprep.subr.bf16.mxu0 0
        %657 = vmatpush1.bf16.msra.mxu0 %v637
        %658 = vmatprep.subr.bf16.mxu0 0
        %659 = vmatpush1.bf16.msra.mxu0 %v636
        %660 = vmatprep.subr.bf16.mxu0 0
        %661 = vmatpush2.bf16.msra.mxu0 0
        %662 = vmatprep.subr.bf16.mxu0 0
        %663 = vmatpush2.bf16.msra.mxu0 0
        %664 = vmatprep.subr.bf16.mxu0 0
        %665 = vmatpush2.bf16.msra.mxu0 0
        %666 = vmatprep.subr.bf16.mxu0 0
        %667 = vmatpush2.bf16.msra.mxu0 0
        %668 = vmatprep.subr.bf16.mxu0 0
        %669 = vmatpush2.bf16.msra.mxu0 0
        %670 = vmatprep.subr.bf16.mxu0 0
        %671 = vmatpush2.bf16.msra.mxu0 0
        %672 = vmatprep.subr.bf16.mxu0 0
        %673 = vmatpush2.bf16.msra.mxu0 0
        %674 = vmatprep.subr.bf16.mxu0 0
        %675 = vmatpush2.bf16.msra.mxu0 0
        %676 = vmatprep.mubr.bf16.mxu0 0
        %677 = vmatmul.mubr.bf16.gmra.mxu0 %v642
        %v678 = vpop.f32.mrf.mxu0
        %v679 = vadd.f32 %v626, %v678
        %v680 = vpop.f32.mrf.mxu0
        %v681 = vpop.f32.mrf.mxu0
        %v682 = vpop.f32.mrf.mxu0
        %683 = vdwg.mxu0
        %v684 = vld [vmem:[#allocation11] sm:$0xf]
        %v685 = vld [vmem:[#allocation11 + $0x4] sm:$0xf]
        %v686 = vld [vmem:[#allocation11 + $0x8] sm:$0xf]
        %v687 = vld [vmem:[#allocation11 + $0xc] sm:$0xf]
        %v688 = vld [vmem:[%s7] sm:$0x1]
        %v690 = vlaneseq
        %v691 = vshrl.u32 %v690, 7
        %v692 = vsub.s32 0, %v691
        %v693 = vrot.slane %v688, %v692
        %v699 = vunpack.c.l.b16 %v684
        %v700 = vunpack.c.l.b16 %v685
        %v701 = vunpack.c.l.b16 %v686
        %v702 = vunpack.c.l.b16 %v687
        %v703 = vpack.c.b16 %v700, %v699
        %v704 = vpack.c.b16 %v702, %v701
        %v708 = vsel %vm640, %v615, 0
        %710 = vmatprep.subr.bf16.mxu0 0
        %711 = vmatpush1.bf16.msra.mxu0 0
        %712 = vmatprep.subr.bf16.mxu0 0
        %713 = vmatpush1.bf16.msra.mxu0 0
        %714 = vmatprep.subr.bf16.mxu0 0
        %715 = vmatpush1.bf16.msra.mxu0 0
        %716 = vmatprep.subr.bf16.mxu0 0
        %717 = vmatpush1.bf16.msra.mxu0 0
        %718 = vmatprep.subr.bf16.mxu0 0
        %719 = vmatpush1.bf16.msra.mxu0 0
        %720 = vmatprep.subr.bf16.mxu0 0
        %721 = vmatpush1.bf16.msra.mxu0 0
        %722 = vmatprep.subr.bf16.mxu0 0
        %723 = vmatpush1.bf16.msra.mxu0 %v704
        %724 = vmatprep.subr.bf16.mxu0 0
        %725 = vmatpush1.bf16.msra.mxu0 %v703
        %726 = vmatprep.subr.bf16.mxu0 0
        %727 = vmatpush2.bf16.msra.mxu0 0
        %728 = vmatprep.subr.bf16.mxu0 0
        %729 = vmatpush2.bf16.msra.mxu0 0
        %730 = vmatprep.subr.bf16.mxu0 0
        %731 = vmatpush2.bf16.msra.mxu0 0
        %732 = vmatprep.subr.bf16.mxu0 0
        %733 = vmatpush2.bf16.msra.mxu0 0
        %734 = vmatprep.subr.bf16.mxu0 0
        %735 = vmatpush2.bf16.msra.mxu0 0
        %736 = vmatprep.subr.bf16.mxu0 0
        %737 = vmatpush2.bf16.msra.mxu0 0
        %738 = vmatprep.subr.bf16.mxu0 0
        %739 = vmatpush2.bf16.msra.mxu0 0
        %740 = vmatprep.subr.bf16.mxu0 0
        %741 = vmatpush2.bf16.msra.mxu0 0
        %742 = vmatprep.mubr.bf16.mxu0 0
        %743 = vmatmul.mubr.bf16.gmra.mxu0 %v708
        %v744 = vpop.f32.mrf.mxu0
        %v745 = vadd.f32 %v693, %v744
        %v746 = vpop.f32.mrf.mxu0
        %v747 = vpop.f32.mrf.mxu0
        %v748 = vpop.f32.mrf.mxu0
        %749 = vdwg.mxu0
        %v750 = vld [vmem:[#allocation13] sm:$0xf]
        %v751 = vld [vmem:[#allocation13 + $0x4] sm:$0xf]
        %v752 = vld [vmem:[#allocation13 + $0x8] sm:$0xf]
        %v753 = vld [vmem:[#allocation13 + $0xc] sm:$0xf]
        %v754 = vld [vmem:[#allocation14] sm:$0x1]
        %v756 = vlaneseq
        %v757 = vshrl.u32 %v756, 7
        %v758 = vsub.s32 0, %v757
        %v759 = vrot.slane %v754, %v758
        %v765 = vunpack.c.l.b16 %v750
        %v766 = vunpack.c.l.b16 %v751
        %v767 = vunpack.c.l.b16 %v752
        %v768 = vunpack.c.l.b16 %v753
        %v769 = vpack.c.b16 %v766, %v765
        %v770 = vpack.c.b16 %v768, %v767
        %v774 = vsel %vm640, %v616, 0
        %776 = vmatprep.subr.bf16.mxu0 0
        %777 = vmatpush1.bf16.msra.mxu0 0
        %778 = vmatprep.subr.bf16.mxu0 0
        %779 = vmatpush1.bf16.msra.mxu0 0
        %780 = vmatprep.subr.bf16.mxu0 0
        %781 = vmatpush1.bf16.msra.mxu0 0
        %782 = vmatprep.subr.bf16.mxu0 0
        %783 = vmatpush1.bf16.msra.mxu0 0
        %784 = vmatprep.subr.bf16.mxu0 0
        %785 = vmatpush1.bf16.msra.mxu0 0
        %786 = vmatprep.subr.bf16.mxu0 0
        %787 = vmatpush1.bf16.msra.mxu0 0
        %788 = vmatprep.subr.bf16.mxu0 0
        %789 = vmatpush1.bf16.msra.mxu0 %v770
        %790 = vmatprep.subr.bf16.mxu0 0
        %791 = vmatpush1.bf16.msra.mxu0 %v769
        %792 = vmatprep.subr.bf16.mxu0 0
        %793 = vmatpush2.bf16.msra.mxu0 0
        %794 = vmatprep.subr.bf16.mxu0 0
        %795 = vmatpush2.bf16.msra.mxu0 0
        %796 = vmatprep.subr.bf16.mxu0 0
        %797 = vmatpush2.bf16.msra.mxu0 0
        %798 = vmatprep.subr.bf16.mxu0 0
        %799 = vmatpush2.bf16.msra.mxu0 0
        %800 = vmatprep.subr.bf16.mxu0 0
        %801 = vmatpush2.bf16.msra.mxu0 0
        %802 = vmatprep.subr.bf16.mxu0 0
        %803 = vmatpush2.bf16.msra.mxu0 0
        %804 = vmatprep.subr.bf16.mxu0 0
        %805 = vmatpush2.bf16.msra.mxu0 0
        %806 = vmatprep.subr.bf16.mxu0 0
        %807 = vmatpush2.bf16.msra.mxu0 0
        %808 = vmatprep.mubr.bf16.mxu0 0
        %809 = vmatmul.mubr.bf16.gmra.mxu0 %v774
        %v810 = vpop.f32.mrf.mxu0
        %v811 = vadd.f32 %v759, %v810
        %v812 = vpop.f32.mrf.mxu0
        %v813 = vpop.f32.mrf.mxu0
        %v814 = vpop.f32.mrf.mxu0
        %815 = vdwg.mxu0
        %v816 = vpack.c.bf16 %v679, %v679
        %v817 = vpack.c.bf16 %v745, %v745
        %v818 = vpack.c.bf16 %v811, %v811
        %v819 = vld [vmem:[%s541] sm:$0xf]
        %v820 = vunpack.c.l.bf16 %v819
        %vm821 = vcmp.gt.f32.partialorder %v820, 0.5
        %vm822 = vcmask 64512
        %v824 = vsel %vm822, %v816, 0
        %v827 = vsel %vm822, %v817, 0
        %829 = vmatprep.subr.bf16.mxu0 0
        %830 = vmatpush1.bf16.xpose.msra.mxu0 0
        %831 = vmatprep.subr.bf16.mxu0 0
        %832 = vmatpush1.bf16.xpose.msra.mxu0 0
        %833 = vmatprep.subr.bf16.mxu0 0
        %834 = vmatpush1.bf16.xpose.msra.mxu0 0
        %835 = vmatprep.subr.bf16.mxu0 0
        %836 = vmatpush1.bf16.xpose.msra.mxu0 0
        %837 = vmatprep.subr.bf16.mxu0 0
        %838 = vmatpush1.bf16.xpose.msra.mxu0 0
        %839 = vmatprep.subr.bf16.mxu0 0
        %840 = vmatpush1.bf16.xpose.msra.mxu0 0
        %841 = vmatprep.subr.bf16.mxu0 0
        %842 = vmatpush1.bf16.xpose.msra.mxu0 0
        %843 = vmatprep.subr.bf16.mxu0 0
        %844 = vmatpush1.bf16.xpose.msra.mxu0 %v827
        %845 = vmatprep.subr.bf16.mxu0 0
        %846 = vmatpush2.bf16.xpose.msra.mxu0 0
        %847 = vmatprep.subr.bf16.mxu0 0
        %848 = vmatpush2.bf16.xpose.msra.mxu0 0
        %849 = vmatprep.subr.bf16.mxu0 0
        %850 = vmatpush2.bf16.xpose.msra.mxu0 0
        %851 = vmatprep.subr.bf16.mxu0 0
        %852 = vmatpush2.bf16.xpose.msra.mxu0 0
        %853 = vmatprep.subr.bf16.mxu0 0
        %854 = vmatpush2.bf16.xpose.msra.mxu0 0
        %855 = vmatprep.subr.bf16.mxu0 0
        %856 = vmatpush2.bf16.xpose.msra.mxu0 0
        %857 = vmatprep.subr.bf16.mxu0 0
        %858 = vmatpush2.bf16.xpose.msra.mxu0 0
        %859 = vmatprep.subr.bf16.mxu0 0
        %860 = vmatpush2.bf16.xpose.msra.mxu0 0
        %861 = vmatprep.mubr.bf16.mxu0 0
        %862 = vmatmul.mubr.bf16.gmra.mxu0 %v824
        %v863 = vpop.f32.mrf.mxu0
        %v864 = vadd.f32 0.0, %v863
        %v865 = vpop.f32.mrf.mxu0
        %v866 = vpop.f32.mrf.mxu0
        %v867 = vpop.f32.mrf.mxu0
        %868 = vdwg.mxu0
        %v869 = vsel %vm821, -10000.0, %v864
        %v870 = vsel %vm822, %v869, -inf
        %871 = vmax.xlane.f32.xlu0 %v870
        %v872 = vpop.xlane.xlu0 %871
        %v873 = vsub.f32 %v869, %v872
        %v874 = vmul.f32 %v873, 1.442695
        %v875 = vpow.pop %v874
        %v876 = vsel %vm822, %v875, 0.0
        %877 = vadd.xlane.f32.xlu0 %v876
        %v878 = vpop.xlane.xlu0 %877
        %v879 = vrcp.pop %v878
        %v880 = vmul.f32 %v875, %v879
        %v881 = vpack.c.bf16 %v880, %v880
        %v883 = vsel %vm822, %v881, 0
        %vm885 = vcmask 1043456
        %v887 = vsel %vm885, %v818, 0
        %889 = vmatprep.subr.bf16.mxu0 0
        %890 = vmatpush1.bf16.msra.mxu0 0
        %891 = vmatprep.subr.bf16.mxu0 0
        %892 = vmatpush1.bf16.msra.mxu0 0
        %893 = vmatprep.subr.bf16.mxu0 0
        %894 = vmatpush1.bf16.msra.mxu0 0
        %895 = vmatprep.subr.bf16.mxu0 0
        %896 = vmatpush1.bf16.msra.mxu0 0
        %897 = vmatprep.subr.bf16.mxu0 0
        %898 = vmatpush1.bf16.msra.mxu0 0
        %899 = vmatprep.subr.bf16.mxu0 0
        %900 = vmatpush1.bf16.msra.mxu0 0
        %901 = vmatprep.subr.bf16.mxu0 0
        %902 = vmatpush1.bf16.msra.mxu0 0
        %903 = vmatprep.subr.bf16.mxu0 0
        %904 = vmatpush1.bf16.msra.mxu0 %v887
        %905 = vmatprep.subr.bf16.mxu0 0
        %906 = vmatpush2.bf16.msra.mxu0 0
        %907 = vmatprep.subr.bf16.mxu0 0
        %908 = vmatpush2.bf16.msra.mxu0 0
        %909 = vmatprep.subr.bf16.mxu0 0
        %910 = vmatpush2.bf16.msra.mxu0 0
        %911 = vmatprep.subr.bf16.mxu0 0
        %912 = vmatpush2.bf16.msra.mxu0 0
        %913 = vmatprep.subr.bf16.mxu0 0
        %914 = vmatpush2.bf16.msra.mxu0 0
        %915 = vmatprep.subr.bf16.mxu0 0
        %916 = vmatpush2.bf16.msra.mxu0 0
        %917 = vmatprep.subr.bf16.mxu0 0
        %918 = vmatpush2.bf16.msra.mxu0 0
        %919 = vmatprep.subr.bf16.mxu0 0
        %920 = vmatpush2.bf16.msra.mxu0 0
        %921 = vmatprep.mubr.bf16.mxu0 0
        %922 = vmatmul.mubr.bf16.gmra.mxu0 %v883
        %v923 = vpop.f32.mrf.mxu0
        %v924 = vadd.f32 0.0, %v923
        %v925 = vpop.f32.mrf.mxu0
        %v926 = vpop.f32.mrf.mxu0
        %v927 = vpop.f32.mrf.mxu0
        %928 = vdwg.mxu0
        %930 = vrot.lane.b32.xlu0 %v816, 120
        %v931 = vpop.permute.xlu0 %930
        %933 = vrot.lane.b32.xlu0 %v817, 120
        %v934 = vpop.permute.xlu0 %933
        %v936 = vsel %vm822, %v931, 0
        %v939 = vsel %vm822, %v934, 0
        %941 = vmatprep.subr.bf16.mxu0 0
        %942 = vmatpush1.bf16.xpose.msra.mxu0 0
        %943 = vmatprep.subr.bf16.mxu0 0
        %944 = vmatpush1.bf16.xpose.msra.mxu0 0
        %945 = vmatprep.subr.bf16.mxu0 0
        %946 = vmatpush1.bf16.xpose.msra.mxu0 0
        %947 = vmatprep.subr.bf16.mxu0 0
        %948 = vmatpush1.bf16.xpose.msra.mxu0 0
        %949 = vmatprep.subr.bf16.mxu0 0
        %950 = vmatpush1.bf16.xpose.msra.mxu0 0
        %951 = vmatprep.subr.bf16.mxu0 0
        %952 = vmatpush1.bf16.xpose.msra.mxu0 0
        %953 = vmatprep.subr.bf16.mxu0 0
        %954 = vmatpush1.bf16.xpose.msra.mxu0 0
        %955 = vmatprep.subr.bf16.mxu0 0
        %956 = vmatpush1.bf16.xpose.msra.mxu0 %v939
        %957 = vmatprep.subr.bf16.mxu0 0
        %958 = vmatpush2.bf16.xpose.msra.mxu0 0
        %959 = vmatprep.subr.bf16.mxu0 0
        %960 = vmatpush2.bf16.xpose.msra.mxu0 0
        %961 = vmatprep.subr.bf16.mxu0 0
        %962 = vmatpush2.bf16.xpose.msra.mxu0 0
        %963 = vmatprep.subr.bf16.mxu0 0
        %964 = vmatpush2.bf16.xpose.msra.mxu0 0
        %965 = vmatprep.subr.bf16.mxu0 0
        %966 = vmatpush2.bf16.xpose.msra.mxu0 0
        %967 = vmatprep.subr.bf16.mxu0 0
        %968 = vmatpush2.bf16.xpose.msra.mxu0 0
        %969 = vmatprep.subr.bf16.mxu0 0
        %970 = vmatpush2.bf16.xpose.msra.mxu0 0
        %971 = vmatprep.subr.bf16.mxu0 0
        %972 = vmatpush2.bf16.xpose.msra.mxu0 0
        %973 = vmatprep.mubr.bf16.mxu0 0
        %974 = vmatmul.mubr.bf16.gmra.mxu0 %v936
        %v975 = vpop.f32.mrf.mxu0
        %v976 = vadd.f32 0.0, %v975
        %v977 = vpop.f32.mrf.mxu0
        %v978 = vpop.f32.mrf.mxu0
        %v979 = vpop.f32.mrf.mxu0
        %980 = vdwg.mxu0
        %v981 = vsel %vm821, -10000.0, %v976
        %v982 = vsel %vm822, %v981, -inf
        %983 = vmax.xlane.f32.xlu0 %v982
        %v984 = vpop.xlane.xlu0 %983
        %v985 = vsub.f32 %v981, %v984
        %v986 = vmul.f32 %v985, 1.442695
        %v987 = vpow.pop %v986
        %v988 = vsel %vm822, %v987, 0.0
        %989 = vadd.xlane.f32.xlu0 %v988
        %v990 = vpop.xlane.xlu0 %989
        %v991 = vrcp.pop %v990
        %v992 = vmul.f32 %v987, %v991
        %v993 = vpack.c.bf16 %v992, %v992
        %995 = vrot.lane.b32.xlu0 %v818, 120
        %v996 = vpop.permute.xlu0 %995
        %v998 = vsel %vm822, %v993, 0
        %v1001 = vsel %vm885, %v996, 0
        %1003 = vmatprep.subr.bf16.mxu0 0
        %1004 = vmatpush1.bf16.msra.mxu0 0
        %1005 = vmatprep.subr.bf16.mxu0 0
        %1006 = vmatpush1.bf16.msra.mxu0 0
        %1007 = vmatprep.subr.bf16.mxu0 0
        %1008 = vmatpush1.bf16.msra.mxu0 0
        %1009 = vmatprep.subr.bf16.mxu0 0
        %1010 = vmatpush1.bf16.msra.mxu0 0
        %1011 = vmatprep.subr.bf16.mxu0 0
        %1012 = vmatpush1.bf16.msra.mxu0 0
        %1013 = vmatprep.subr.bf16.mxu0 0
        %1014 = vmatpush1.bf16.msra.mxu0 0
        %1015 = vmatprep.subr.bf16.mxu0 0
        %1016 = vmatpush1.bf16.msra.mxu0 0
        %1017 = vmatprep.subr.bf16.mxu0 0
        %1018 = vmatpush1.bf16.msra.mxu0 %v1001
        %1019 = vmatprep.subr.bf16.mxu0 0
        %1020 = vmatpush2.bf16.msra.mxu0 0
        %1021 = vmatprep.subr.bf16.mxu0 0
        %1022 = vmatpush2.bf16.msra.mxu0 0
        %1023 = vmatprep.subr.bf16.mxu0 0
        %1024 = vmatpush2.bf16.msra.mxu0 0
        %1025 = vmatprep.subr.bf16.mxu0 0
        %1026 = vmatpush2.bf16.msra.mxu0 0
        %1027 = vmatprep.subr.bf16.mxu0 0
        %1028 = vmatpush2.bf16.msra.mxu0 0
        %1029 = vmatprep.subr.bf16.mxu0 0
        %1030 = vmatpush2.bf16.msra.mxu0 0
        %1031 = vmatprep.subr.bf16.mxu0 0
        %1032 = vmatpush2.bf16.msra.mxu0 0
        %1033 = vmatprep.subr.bf16.mxu0 0
        %1034 = vmatpush2.bf16.msra.mxu0 0
        %1035 = vmatprep.mubr.bf16.mxu0 0
        %1036 = vmatmul.mubr.bf16.gmra.mxu0 %v998
        %v1037 = vpop.f32.mrf.mxu0
        %v1038 = vadd.f32 0.0, %v1037
        %v1039 = vpop.f32.mrf.mxu0
        %v1040 = vpop.f32.mrf.mxu0
        %v1041 = vpop.f32.mrf.mxu0
        %1042 = vdwg.mxu0
        %1043 = vrot.lane.b32.xlu0 %v816, 112
        %v1044 = vpop.permute.xlu0 %1043
        %1045 = vrot.lane.b32.xlu0 %v817, 112
        %v1046 = vpop.permute.xlu0 %1045
        %v1048 = vsel %vm822, %v1044, 0
        %v1051 = vsel %vm822, %v1046, 0
        %1053 = vmatprep.subr.bf16.mxu0 0
        %1054 = vmatpush1.bf16.xpose.msra.mxu0 0
        %1055 = vmatprep.subr.bf16.mxu0 0
        %1056 = vmatpush1.bf16.xpose.msra.mxu0 0
        %1057 = vmatprep.subr.bf16.mxu0 0
        %1058 = vmatpush1.bf16.xpose.msra.mxu0 0
        %1059 = vmatprep.subr.bf16.mxu0 0
        %1060 = vmatpush1.bf16.xpose.msra.mxu0 0
        %1061 = vmatprep.subr.bf16.mxu0 0
        %1062 = vmatpush1.bf16.xpose.msra.mxu0 0
        %1063 = vmatprep.subr.bf16.mxu0 0
        %1064 = vmatpush1.bf16.xpose.msra.mxu0 0
        %1065 = vmatprep.subr.bf16.mxu0 0
        %1066 = vmatpush1.bf16.xpose.msra.mxu0 0
        %1067 = vmatprep.subr.bf16.mxu0 0
        %1068 = vmatpush1.bf16.xpose.msra.mxu0 %v1051
        %1069 = vmatprep.subr.bf16.mxu0 0
        %1070 = vmatpush2.bf16.xpose.msra.mxu0 0
        %1071 = vmatprep.subr.bf16.mxu0 0
        %1072 = vmatpush2.bf16.xpose.msra.mxu0 0
        %1073 = vmatprep.subr.bf16.mxu0 0
        %1074 = vmatpush2.bf16.xpose.msra.mxu0 0
        %1075 = vmatprep.subr.bf16.mxu0 0
        %1076 = vmatpush2.bf16.xpose.msra.mxu0 0
        %1077 = vmatprep.subr.bf16.mxu0 0
        %1078 = vmatpush2.bf16.xpose.msra.mxu0 0
        %1079 = vmatprep.subr.bf16.mxu0 0
        %1080 = vmatpush2.bf16.xpose.msra.mxu0 0
        %1081 = vmatprep.subr.bf16.mxu0 0
        %1082 = vmatpush2.bf16.xpose.msra.mxu0 0
        %1083 = vmatprep.subr.bf16.mxu0 0
        %1084 = vmatpush2.bf16.xpose.msra.mxu0 0
        %1085 = vmatprep.mubr.bf16.mxu0 0
        %1086 = vmatmul.mubr.bf16.gmra.mxu0 %v1048
        %v1087 = vpop.f32.mrf.mxu0
        %v1088 = vadd.f32 0.0, %v1087
        %v1089 = vpop.f32.mrf.mxu0
        %v1090 = vpop.f32.mrf.mxu0
        %v1091 = vpop.f32.mrf.mxu0
        %1092 = vdwg.mxu0
        %v1093 = vsel %vm821, -10000.0, %v1088
        %v1094 = vsel %vm822, %v1093, -inf
        %1095 = vmax.xlane.f32.xlu0 %v1094
        %v1096 = vpop.xlane.xlu0 %1095
        %v1097 = vsub.f32 %v1093, %v1096
        %v1098 = vmul.f32 %v1097, 1.442695
        %v1099 = vpow.pop %v1098
        %v1100 = vsel %vm822, %v1099, 0.0
        %1101 = vadd.xlane.f32.xlu0 %v1100
        %v1102 = vpop.xlane.xlu0 %1101
        %v1103 = vrcp.pop %v1102
        %v1104 = vmul.f32 %v1099, %v1103
        %v1105 = vpack.c.bf16 %v1104, %v1104
        %1106 = vrot.lane.b32.xlu0 %v818, 112
        %v1107 = vpop.permute.xlu0 %1106
        %v1109 = vsel %vm822, %v1105, 0
        %v1112 = vsel %vm885, %v1107, 0
        %1114 = vmatprep.subr.bf16.mxu0 0
        %1115 = vmatpush1.bf16.msra.mxu0 0
        %1116 = vmatprep.subr.bf16.mxu0 0
        %1117 = vmatpush1.bf16.msra.mxu0 0
        %1118 = vmatprep.subr.bf16.mxu0 0
        %1119 = vmatpush1.bf16.msra.mxu0 0
        %1120 = vmatprep.subr.bf16.mxu0 0
        %1121 = vmatpush1.bf16.msra.mxu0 0
        %1122 = vmatprep.subr.bf16.mxu0 0
        %1123 = vmatpush1.bf16.msra.mxu0 0
        %1124 = vmatprep.subr.bf16.mxu0 0
        %1125 = vmatpush1.bf16.msra.mxu0 0
        %1126 = vmatprep.subr.bf16.mxu0 0
        %1127 = vmatpush1.bf16.msra.mxu0 0
        %1128 = vmatprep.subr.bf16.mxu0 0
        %1129 = vmatpush1.bf16.msra.mxu0 %v1112
        %1130 = vmatprep.subr.bf16.mxu0 0
        %1131 = vmatpush2.bf16.msra.mxu0 0
        %1132 = vmatprep.subr.bf16.mxu0 0
        %1133 = vmatpush2.bf16.msra.mxu0 0
        %1134 = vmatprep.subr.bf16.mxu0 0
        %1135 = vmatpush2.bf16.msra.mxu0 0
        %1136 = vmatprep.subr.bf16.mxu0 0
        %1137 = vmatpush2.bf16.msra.mxu0 0
        %1138 = vmatprep.subr.bf16.mxu0 0
        %1139 = vmatpush2.bf16.msra.mxu0 0
        %1140 = vmatprep.subr.bf16.mxu0 0
        %1141 = vmatpush2.bf16.msra.mxu0 0
        %1142 = vmatprep.subr.bf16.mxu0 0
        %1143 = vmatpush2.bf16.msra.mxu0 0
        %1144 = vmatprep.subr.bf16.mxu0 0
        %1145 = vmatpush2.bf16.msra.mxu0 0
        %1146 = vmatprep.mubr.bf16.mxu0 0
        %1147 = vmatmul.mubr.bf16.gmra.mxu0 %v1109
        %v1148 = vpop.f32.mrf.mxu0
        %v1149 = vadd.f32 0.0, %v1148
        %v1150 = vpop.f32.mrf.mxu0
        %v1151 = vpop.f32.mrf.mxu0
        %v1152 = vpop.f32.mrf.mxu0
        %1153 = vdwg.mxu0
        %1154 = vrot.lane.b32.xlu0 %v816, 104
        %v1155 = vpop.permute.xlu0 %1154
        %1156 = vrot.lane.b32.xlu0 %v817, 104
        %v1157 = vpop.permute.xlu0 %1156
        %v1159 = vsel %vm822, %v1155, 0
        %v1162 = vsel %vm822, %v1157, 0
        %1164 = vmatprep.subr.bf16.mxu0 0
        %1165 = vmatpush1.bf16.xpose.msra.mxu0 0
        %1166 = vmatprep.subr.bf16.mxu0 0
        %1167 = vmatpush1.bf16.xpose.msra.mxu0 0
        %1168 = vmatprep.subr.bf16.mxu0 0
        %1169 = vmatpush1.bf16.xpose.msra.mxu0 0
        %1170 = vmatprep.subr.bf16.mxu0 0
        %1171 = vmatpush1.bf16.xpose.msra.mxu0 0
        %1172 = vmatprep.subr.bf16.mxu0 0
        %1173 = vmatpush1.bf16.xpose.msra.mxu0 0
        %1174 = vmatprep.subr.bf16.mxu0 0
        %1175 = vmatpush1.bf16.xpose.msra.mxu0 0
        %1176 = vmatprep.subr.bf16.mxu0 0
        %1177 = vmatpush1.bf16.xpose.msra.mxu0 0
        %1178 = vmatprep.subr.bf16.mxu0 0
        %1179 = vmatpush1.bf16.xpose.msra.mxu0 %v1162
        %1180 = vmatprep.subr.bf16.mxu0 0
        %1181 = vmatpush2.bf16.xpose.msra.mxu0 0
        %1182 = vmatprep.subr.bf16.mxu0 0
        %1183 = vmatpush2.bf16.xpose.msra.mxu0 0
        %1184 = vmatprep.subr.bf16.mxu0 0
        %1185 = vmatpush2.bf16.xpose.msra.mxu0 0
        %1186 = vmatprep.subr.bf16.mxu0 0
        %1187 = vmatpush2.bf16.xpose.msra.mxu0 0
        %1188 = vmatprep.subr.bf16.mxu0 0
        %1189 = vmatpush2.bf16.xpose.msra.mxu0 0
        %1190 = vmatprep.subr.bf16.mxu0 0
        %1191 = vmatpush2.bf16.xpose.msra.mxu0 0
        %1192 = vmatprep.subr.bf16.mxu0 0
        %1193 = vmatpush2.bf16.xpose.msra.mxu0 0
        %1194 = vmatprep.subr.bf16.mxu0 0
        %1195 = vmatpush2.bf16.xpose.msra.mxu0 0
        %1196 = vmatprep.mubr.bf16.mxu0 0
        %1197 = vmatmul.mubr.bf16.gmra.mxu0 %v1159
        %v1198 = vpop.f32.mrf.mxu0
        %v1199 = vadd.f32 0.0, %v1198
        %v1200 = vpop.f32.mrf.mxu0
        %v1201 = vpop.f32.mrf.mxu0
        %v1202 = vpop.f32.mrf.mxu0
        %1203 = vdwg.mxu0
        %v1204 = vsel %vm821, -10000.0, %v1199
        %v1205 = vsel %vm822, %v1204, -inf
        %1206 = vmax.xlane.f32.xlu0 %v1205
        %v1207 = vpop.xlane.xlu0 %1206
        %v1208 = vsub.f32 %v1204, %v1207
        %v1209 = vmul.f32 %v1208, 1.442695
        %v1210 = vpow.pop %v1209
        %v1211 = vsel %vm822, %v1210, 0.0
        %1212 = vadd.xlane.f32.xlu0 %v1211
        %v1213 = vpop.xlane.xlu0 %1212
        %v1214 = vrcp.pop %v1213
        %v1215 = vmul.f32 %v1210, %v1214
        %v1216 = vpack.c.bf16 %v1215, %v1215
        %1217 = vrot.lane.b32.xlu0 %v818, 104
        %v1218 = vpop.permute.xlu0 %1217
        %v1220 = vsel %vm822, %v1216, 0
        %v1223 = vsel %vm885, %v1218, 0
        %1225 = vmatprep.subr.bf16.mxu0 0
        %1226 = vmatpush1.bf16.msra.mxu0 0
        %1227 = vmatprep.subr.bf16.mxu0 0
        %1228 = vmatpush1.bf16.msra.mxu0 0
        %1229 = vmatprep.subr.bf16.mxu0 0
        %1230 = vmatpush1.bf16.msra.mxu0 0
        %1231 = vmatprep.subr.bf16.mxu0 0
        %1232 = vmatpush1.bf16.msra.mxu0 0
        %1233 = vmatprep.subr.bf16.mxu0 0
        %1234 = vmatpush1.bf16.msra.mxu0 0
        %1235 = vmatprep.subr.bf16.mxu0 0
        %1236 = vmatpush1.bf16.msra.mxu0 0
        %1237 = vmatprep.subr.bf16.mxu0 0
        %1238 = vmatpush1.bf16.msra.mxu0 0
        %1239 = vmatprep.subr.bf16.mxu0 0
        %1240 = vmatpush1.bf16.msra.mxu0 %v1223
        %1241 = vmatprep.subr.bf16.mxu0 0
        %1242 = vmatpush2.bf16.msra.mxu0 0
        %1243 = vmatprep.subr.bf16.mxu0 0
        %1244 = vmatpush2.bf16.msra.mxu0 0
        %1245 = vmatprep.subr.bf16.mxu0 0
        %1246 = vmatpush2.bf16.msra.mxu0 0
        %1247 = vmatprep.subr.bf16.mxu0 0
        %1248 = vmatpush2.bf16.msra.mxu0 0
        %1249 = vmatprep.subr.bf16.mxu0 0
        %1250 = vmatpush2.bf16.msra.mxu0 0
        %1251 = vmatprep.subr.bf16.mxu0 0
        %1252 = vmatpush2.bf16.msra.mxu0 0
        %1253 = vmatprep.subr.bf16.mxu0 0
        %1254 = vmatpush2.bf16.msra.mxu0 0
        %1255 = vmatprep.subr.bf16.mxu0 0
        %1256 = vmatpush2.bf16.msra.mxu0 0
        %1257 = vmatprep.mubr.bf16.mxu0 0
        %1258 = vmatmul.mubr.bf16.gmra.mxu0 %v1220
        %v1259 = vpop.f32.mrf.mxu0
        %v1260 = vadd.f32 0.0, %v1259
        %v1261 = vpop.f32.mrf.mxu0
        %v1262 = vpop.f32.mrf.mxu0
        %v1263 = vpop.f32.mrf.mxu0
        %1264 = vdwg.mxu0
        %1266 = vrot.lane.b32.xlu0 %v1038, 8
        %v1267 = vpop.permute.xlu0 %1266
        %1270 = vrot.lane.b32.xlu0 %v1149, 16
        %v1271 = vpop.permute.xlu0 %1270
        %1274 = vrot.lane.b32.xlu0 %v1260, 24
        %v1275 = vpop.permute.xlu0 %1274
        %v1277 = vsel %vm822, %v924, %v1267
        %vm1278 = vcmask 130048
        %v1279 = vsel %vm1278, %v1277, %v1271
        %vm1280 = vcmask 195584
        %v1281 = vsel %vm1280, %v1279, %v1275
        %v1282 = vpack.c.bf16 %v1281, %v1281
        %v1283 = vld [vmem:[%s10] sm:$0xf]
        %v1284 = vld [vmem:[%s10 + $0x4] sm:$0xf]
        %v1285 = vld [vmem:[%s10 + $0x8] sm:$0xf]
        %v1286 = vld [vmem:[%s10 + $0xc] sm:$0xf]
        %v1287 = vld [vmem:[%s11] sm:$0x1]
        %v1289 = vlaneseq
        %v1290 = vshrl.u32 %v1289, 7
        %v1291 = vsub.s32 0, %v1290
        %v1292 = vrot.slane %v1287, %v1291
        %v1298 = vunpack.c.l.b16 %v1283
        %v1299 = vunpack.c.l.b16 %v1284
        %v1300 = vunpack.c.l.b16 %v1285
        %v1301 = vunpack.c.l.b16 %v1286
        %v1302 = vpack.c.b16 %v1299, %v1298
        %v1303 = vpack.c.b16 %v1301, %v1300
        %v1307 = vsel %vm640, %v1282, 0
        %1309 = vmatprep.subr.bf16.mxu0 0
        %1310 = vmatpush1.bf16.msra.mxu0 0
        %1311 = vmatprep.subr.bf16.mxu0 0
        %1312 = vmatpush1.bf16.msra.mxu0 0
        %1313 = vmatprep.subr.bf16.mxu0 0
        %1314 = vmatpush1.bf16.msra.mxu0 0
        %1315 = vmatprep.subr.bf16.mxu0 0
        %1316 = vmatpush1.bf16.msra.mxu0 0
        %1317 = vmatprep.subr.bf16.mxu0 0
        %1318 = vmatpush1.bf16.msra.mxu0 0
        %1319 = vmatprep.subr.bf16.mxu0 0
        %1320 = vmatpush1.bf16.msra.mxu0 0
        %1321 = vmatprep.subr.bf16.mxu0 0
        %1322 = vmatpush1.bf16.msra.mxu0 %v1303
        %1323 = vmatprep.subr.bf16.mxu0 0
        %1324 = vmatpush1.bf16.msra.mxu0 %v1302
        %1325 = vmatprep.subr.bf16.mxu0 0
        %1326 = vmatpush2.bf16.msra.mxu0 0
        %1327 = vmatprep.subr.bf16.mxu0 0
        %1328 = vmatpush2.bf16.msra.mxu0 0
        %1329 = vmatprep.subr.bf16.mxu0 0
        %1330 = vmatpush2.bf16.msra.mxu0 0
        %1331 = vmatprep.subr.bf16.mxu0 0
        %1332 = vmatpush2.bf16.msra.mxu0 0
        %1333 = vmatprep.subr.bf16.mxu0 0
        %1334 = vmatpush2.bf16.msra.mxu0 0
        %1335 = vmatprep.subr.bf16.mxu0 0
        %1336 = vmatpush2.bf16.msra.mxu0 0
        %1337 = vmatprep.subr.bf16.mxu0 0
        %1338 = vmatpush2.bf16.msra.mxu0 0
        %1339 = vmatprep.subr.bf16.mxu0 0
        %1340 = vmatpush2.bf16.msra.mxu0 0
        %1341 = vmatprep.mubr.bf16.mxu0 0
        %1342 = vmatmul.mubr.bf16.gmra.mxu0 %v1307
        %v1343 = vpop.f32.mrf.mxu0
        %v1344 = vadd.f32 %v1292, %v1343
        %v1345 = vpop.f32.mrf.mxu0
        %v1346 = vpop.f32.mrf.mxu0
        %v1347 = vpop.f32.mrf.mxu0
        %1348 = vdwg.mxu0
        %1349 = vst.msk [vmem:[%s612] sm:$0xff] %vm640, %v1344
        %s1350 = sand.u32 %s335, 1
        %s1351 = scalar_lea.sflag [#allocation4], %s1350
        %s1352 = sand.u32 %s335, 1
        %s1353 = smul.addr %s1352, 8
        %s1354 = scalar_lea.vmem [#allocation16], %s1353
        // Predicated region
        $region101: #{tpu_custom_call.1} parent=67 // pred_check
          %p1355 = pneg %p345
        $region102: #{tpu_custom_call.1} parent=67 // pred_check_branch
          %1357 = sbr.rel (%p1355) target = $region104
        $region103: #{tpu_custom_call.1} parent=67 // pred_region
          %s1359 = ssub.s32 128, 128
          %1360 = vsyncadd %s1351, %s1359
          %s1361 = sadd.s32 %s42, %s41
          %s1362 = smul.addr %s1361, 128
          %s1363 = scalar_lea.hbm %s12, %s1362
          %s1365 = sshll.u32 %s1354, 4
          %s1366 = int_to_ptr.vmem [resolvable:$true] %s1365
          %1368 = dma.vmem_to_hbm [thread:$0]  %s1366, 128, %s1363, %s1351
        $region104: #{tpu_custom_call.1} parent=67 // pred_fallthru
          _
      $region68: #{tpu_custom_call.1} parent=5 // pred_fallthru
        _
      %p1369 = scmp.le.s32.totalorder 2, %s32
      // Predicated region
      $region105: #{tpu_custom_call.1} parent=5 // pred_check
        %p1370 = pneg %p1369
      $region106: #{tpu_custom_call.1} parent=5 // pred_check_branch
        %1372 = sbr.rel (%p1370) target = $region108
      $region107: #{tpu_custom_call.1} parent=5 // pred_region
        %s1373 = ssub.s32 %s32, 2
        // Predicated region
        $region109: #{tpu_custom_call.1} parent=107 // pred_check
          %p1374 = pneg %p351
        $region110: #{tpu_custom_call.1} parent=107 // pred_check_branch
          %1376 = sbr.rel (%p1374) target = $region112
        $region111: #{tpu_custom_call.1} parent=107 // pred_region
          %s1377 = sand.u32 %s336, 1
          %s1378 = scalar_lea.sflag [#allocation4], %s1377
          %s1379 = sand.u32 %s336, 1
          %s1380 = smul.addr %s1379, 8
          %s1381 = scalar_lea.vmem [#allocation16], %s1380
          %1382 = dma.done %s1378, 128
        $region112: #{tpu_custom_call.1} parent=107 // pred_fallthru
          _
      $region108: #{tpu_custom_call.1} parent=5 // pred_fallthru
        _
    $region6: #{tpu_custom_call.1} parent=1 // loop_footer
      %s36 = sadd.s32 1, %s32
    $region7: #{tpu_custom_call.1} parent=1 // loop_footer_branch
      %31 = sbr.rel target = $region3
    $region8: #{tpu_custom_call.1} parent=1 // loop_exit
      _
    %1383 = vsyncpa [#allocation3], 1
    %s1384 = scalar_lea.sflag [#allocation3], 1
    %1385 = vsyncpa %s1384, 1
    %1386 = vsyncpa [#allocation6], 1
    %s1387 = scalar_lea.sflag [#allocation6], 1
    %1388 = vsyncpa %s1387, 1
    %1389 = vsyncpa [#allocation9], 1
    %s1390 = scalar_lea.sflag [#allocation9], 1
    %1391 = vsyncpa %s1390, 1
    %1392 = vsyncpa [#allocation12], 1
    %1393 = vsyncpa [#allocation15], 1
    %1394 = vsyncpa [#allocation4], 1
    %s1395 = scalar_lea.sflag [#allocation4], 1
    %1396 = vsyncpa %s1395, 1

</llo_original>
